<compile_context>
chip_gen: v5e
topology: v5e:2x2
jax: 0.10.0
libtpu: 0.0.40
codegen_flags: <defaults>
</compile_context>

<pallas_src>
import jax
import jax.numpy as jnp
import numpy as np
from jax.experimental import pallas as pl
from jax.experimental.pallas import tpu as pltpu


# ---------------- fused Pallas kernel ----------------

def _tattaka_fused_kernel(scalars_ref,          # SMEM (2,): [p, 1/p]
                          patches_ref,          # (TB, Wf*Hf, Kp)  rows ordered (wf, hf)
                          wp_ref, bp_ref,       # (Kp, Cp), (1, Cp)
                          w1_ref, b1_ref,       # (Cp, Hp), (1, Hp)
                          wcat_ref, bcat_ref,   # (Hp, 2*Np), (1, 2*Np)
                          clip_ref,             # (TB, 1, Np)
                          frame_ref):           # (TB, Wf, Np)
    eps = 1e-6
    p = scalars_ref[0]
    inv_p = scalars_ref[1]
    TB, HW, Kp = patches_ref.shape
    _, Wf, Np = frame_ref.shape
    Hf = HW // Wf
    Cp = wp_ref.shape[1]

    # ---- backbone stub: stride-`patch` patch embedding; ONE MXU matmul over the whole
    #      batch block (TB*Wf*Hf rows), 128-lane K and C ----
    patches = patches_ref[...].reshape(TB * HW, Kp)
    feat = (jnp.dot(patches, wp_ref[...], preferred_element_type=jnp.float32)
            + bp_ref[...])                                            # (TB*Wf*Hf, Cp)

    # ---- GeMFreq: clamp(x, eps)**p, mean over freq (Hf), **(1/p).
    #      Rows are (b, wf, hf)-ordered so the freq-mean is a contiguous sublane-group
    #      reduce over axis=-2; lane dim Cp=128 stays dense. ----
    xp = jnp.power(jnp.maximum(feat, eps), p)
    gem = jnp.power(jnp.mean(xp.reshape(TB * Wf, Hf, Cp), axis=1), inv_p)   # (TB*Wf, Cp)

    # ---- dense_layers (dropout = identity in eval): Linear(C, 512) + ReLU ----
    h = jnp.maximum(
        jnp.dot(gem, w1_ref[...], preferred_element_type=jnp.float32) + b1_ref[...],
        0.0)                                                          # (TB*Wf, Hp)

    # ---- attention & fix_scale 1x1 convs fused into ONE wide matmul; split at a
    #      128-aligned column boundary (Np is a multiple of 128) ----
    cat = (jnp.dot(h, wcat_ref[...], preferred_element_type=jnp.float32)
           + bcat_ref[...])                                           # (TB*Wf, 2*Np)
    att = jnp.tanh(cat[:, :Np]).reshape(TB, Wf, Np)                   # tanh(attention(feat))
    fix = cat[:, Np:].reshape(TB, Wf, Np)                             # fix_scale(feat)

    # ---- softmax over the time axis (Wf) per batch element; EUP approximate reciprocal ----
    m = jnp.max(att, axis=1, keepdims=True)
    e = jnp.exp(att - m)
    soft = e * pl.reciprocal(jnp.sum(e, axis=1, keepdims=True), approx=True)

    clip_ref[...] = jnp.sum(jax.nn.sigmoid(fix) * soft,
                            axis=1, keepdims=True)                    # output_clip
    frame_ref[...] = fix                                              # output_frame


# ---------------- wrapper ----------------

def _round_up(x, m):
    return ((x + m - 1) // m) * m


def _pad2(a, rows, cols):
    r, c = a.shape
    return jnp.pad(a, ((0, rows - r), (0, cols - c)))


def tattaka_forward(images, params, *, max_batch_block=64):
    B, _, H, W = images.shape
    patch = params["patch"]
    Hf, Wf = H // patch, W // patch
    K = patch * patch
    C = params["wp"].shape[1]
    Hd = params["w1"].shape[1]
    N = params["watt"].shape[1]

    Kp = _round_up(K, 128)
    Cp = _round_up(C, 128)
    Hp = _round_up(Hd, 128)
    Np = _round_up(N, 128)

    # batch blocking: whole batch in one grid step when small, else chunks of TB samples.
    TB = min(B, max_batch_block)
    Bp = _round_up(B, TB)
    nb = Bp // TB

    # TODO(synk): timm backbone (config.model.backbone_type) is not reproducible here;
    # substituted a deterministic stride-`patch` patch-embedding matmul as the feature extractor.
    # Patch rows ordered (wf, hf) so the GeM freq-mean is a contiguous sublane-group reduce.
    x = images.reshape(B, 1, Hf, patch, Wf, patch)
    x = jnp.transpose(x, (0, 4, 2, 1, 3, 5)).reshape(B, Wf * Hf, K)
    patches = jnp.pad(x, ((0, Bp - B), (0, 0), (0, Kp - K)))

    # zero-pad weights/biases to 128-lane multiples; attention & fix_scale weights are
    # concatenated so the head is a single wide MXU matmul.  Zero padding is exact
    # (only zero products / zero columns that are sliced off below).
    wp = _pad2(params["wp"], Kp, Cp)
    bp = _pad2(params["bp"], 1, Cp)
    w1 = _pad2(params["w1"], Cp, Hp)
    b1 = _pad2(params["b1"], 1, Hp)
    wcat = jnp.concatenate(
        [_pad2(params["watt"], Hp, Np), _pad2(params["wfix"], Hp, Np)], axis=1)
    bcat = jnp.concatenate(
        [_pad2(params["batt"], 1, Np), _pad2(params["bfix"], 1, Np)], axis=1)

    # GeM exponent and its reciprocal precomputed once (no in-kernel scalar divide).
    scalars = jnp.concatenate(
        [params["p"].reshape(1), 1.0 / params["p"].reshape(1)]).astype(jnp.float32)

    # advisory cost estimate so XLA schedules the surrounding patchify/pad ops well
    flops = 2 * Bp * (Hf * Wf * Kp * Cp + Wf * Cp * Hp + Wf * Hp * 2 * Np)
    transcendentals = Bp * (2 * Hf * Wf * Cp + 2 * Wf * Cp + 3 * Wf * Np)
    bytes_accessed = 4 * (Bp * Wf * Hf * Kp
                          + Kp * Cp + Cp + Cp * Hp + Hp + Hp * 2 * Np + 2 * Np
                          + Bp * Np + Bp * Wf * Np)

    # explicit VMEM limit: resident weights + double-buffered per-block I/O, with margin
    weight_bytes = 4 * (Kp * Cp + Cp + Cp * Hp + Hp + Hp * 2 * Np + 2 * Np)
    block_bytes = 4 * TB * (Wf * Hf * Kp + Np + Wf * Np + 3 * Wf * Hf * Cp)
    vmem_limit = int(max(16 << 20, min(4 * (weight_bytes + block_bytes), 64 << 20)))

    clip_p, frame_p = pl.pallas_call(
        _tattaka_fused_kernel,
        out_shape=(
            jax.ShapeDtypeStruct((Bp, 1, Np), jnp.float32),        # output_clip (padded)
            jax.ShapeDtypeStruct((Bp, Wf, Np), jnp.float32),       # output_frame (padded)
        ),
        grid=(nb,),
        in_specs=[
            pl.BlockSpec(memory_space=pltpu.MemorySpace.SMEM),            # [p, 1/p]
            pl.BlockSpec((TB, Wf * Hf, Kp), lambda b: (b, 0, 0)),         # patches
            pl.BlockSpec((Kp, Cp), lambda b: (0, 0)),                     # wp  (resident)
            pl.BlockSpec((1, Cp), lambda b: (0, 0)),                      # bp
            pl.BlockSpec((Cp, Hp), lambda b: (0, 0)),                     # w1
            pl.BlockSpec((1, Hp), lambda b: (0, 0)),                      # b1
            pl.BlockSpec((Hp, 2 * Np), lambda b: (0, 0)),                 # wcat
            pl.BlockSpec((1, 2 * Np), lambda b: (0, 0)),                  # bcat
        ],
        out_specs=(
            pl.BlockSpec((TB, 1, Np), lambda b: (b, 0, 0)),
            pl.BlockSpec((TB, Wf, Np), lambda b: (b, 0, 0)),
        ),
        compiler_params=pltpu.CompilerParams(
            dimension_semantics=("parallel",),
            vmem_limit_bytes=vmem_limit,
        ),
        cost_estimate=pl.CostEstimate(
            flops=int(flops),
            transcendentals=int(transcendentals),
            bytes_accessed=int(bytes_accessed),
        ),
    )(scalars, patches, wp, bp, w1, b1, wcat, bcat)

    out_clip = clip_p[:B, 0, :N]
    out_frame = frame_p[:B, :, :N]
    return out_clip, out_frame


# ---------------- test ----------------

if __name__ == "__main__":
    key = jax.random.PRNGKey(0)
    B, H, W = 2, 32, 32
    patch = 8
    C_enc = 32        # last encoder channel count (dense_input)
    hidden = 512      # hardcoded in AttHead
    num_class = 264   # AttHead default num_class
    Hf, Wf = H // patch, W // patch

    k = jax.random.split(key, 6)
    images = jax.random.normal(k[0], (B, 1, H, W), jnp.float32)    # NCHW, like PyTorch

    params = {
        "patch": patch,
        "p": jnp.array([3.0], jnp.float32),                                  # GeMFreq p
        "wp": jax.random.normal(k[1], (patch * patch, C_enc), jnp.float32) * 0.05,
        "bp": jnp.zeros((1, C_enc), jnp.float32),
        "w1": jax.random.normal(k[2], (C_enc, hidden), jnp.float32) * 0.05,  # Linear W^T
        "b1": jnp.zeros((1, hidden), jnp.float32),
        "watt": jax.random.normal(k[3], (hidden, num_class), jnp.float32) * 0.05,
        "batt": jax.random.normal(k[4], (1, num_class), jnp.float32) * 0.05,
        "wfix": jax.random.normal(k[5], (hidden, num_class), jnp.float32) * 0.05,
        "bfix": jnp.zeros((1, num_class), jnp.float32),
    }

    out_clip, out_frame = tattaka_forward(images, params)
    out_clip = jax.block_until_ready(out_clip)
    out_frame = jax.block_until_ready(out_frame)

    # pure-JAX reference of the stubbed backbone + AttHead math
    xr = images.reshape(B, 1, Hf, patch, Wf, patch)
    xr = jnp.transpose(xr, (0, 2, 4, 1, 3, 5)).reshape(B, Hf * Wf, patch * patch)
    feat = (xr @ params["wp"] + params["bp"][0]).reshape(B, Hf, Wf, C_enc)
    pv = params["p"][0]
    gem = jnp.power(jnp.mean(jnp.power(jnp.maximum(feat, 1e-6), pv), axis=1), 1.0 / pv)
    h = jnp.maximum(gem @ params["w1"] + params["b1"][0], 0.0)
    att = jnp.tanh(h @ params["watt"] + params["batt"][0])
    fix = h @ params["wfix"] + params["bfix"][0]
    soft = jax.nn.softmax(att, axis=1)
    ref_clip = jnp.sum(jax.nn.sigmoid(fix) * soft, axis=1)
    ref_frame = fix

    assert out_clip.shape == (B, num_class)
    assert out_frame.shape == (B, W // patch, num_class)
    # frame is a pure matmul/GeM path; clip tolerance is relaxed slightly because the
    # in-kernel softmax uses the EUP approximate reciprocal.
    np.testing.assert_allclose(np.asarray(out_frame), np.asarray(ref_frame),
                               atol=1e-3, rtol=1e-3)
    np.testing.assert_allclose(np.asarray(out_clip), np.asarray(ref_clip),
                               atol=3e-3, rtol=3e-3)

    print("KERNEL_OK")
</pallas_src>

<mosaic_0001>
module attributes {stable_mosaic.version = 11 : i64} {
  func.func @_tattaka_fused_kernel(%arg0: i32, %arg1: memref<2xf32, #tpu.memory_space<smem>>, %arg2: memref<2x16x128xf32, #tpu.memory_space<vmem>>, %arg3: memref<128x128xf32, #tpu.memory_space<vmem>>, %arg4: memref<1x128xf32, #tpu.memory_space<vmem>>, %arg5: memref<128x512xf32, #tpu.memory_space<vmem>>, %arg6: memref<1x512xf32, #tpu.memory_space<vmem>>, %arg7: memref<512x768xf32, #tpu.memory_space<vmem>>, %arg8: memref<1x768xf32, #tpu.memory_space<vmem>>, %arg9: memref<2x1x384xf32, #tpu.memory_space<vmem>>, %arg10: memref<2x4x384xf32, #tpu.memory_space<vmem>>) attributes {dimension_semantics = [#tpu.dimension_semantics<parallel>], iteration_bounds = array<i64: 1>, scalar_prefetch = 0 : i64, scratch_operands = 0 : i64, tpu.core_type = #tpu.core_type<tc>, window_params = [{transform_indices = @transform_0, window_bounds = array<i64: 2>}, {transform_indices = @transform_1, window_bounds = array<i64: 2, 16, 128>}, {pipeline_mode = #tpu.pipeline_mode<synchronous>, transform_indices = @transform_2, window_bounds = array<i64: 128, 128>}, {pipeline_mode = #tpu.pipeline_mode<synchronous>, transform_indices = @transform_3, window_bounds = array<i64: 1, 128>}, {pipeline_mode = #tpu.pipeline_mode<synchronous>, transform_indices = @transform_4, window_bounds = array<i64: 128, 512>}, {pipeline_mode = #tpu.pipeline_mode<synchronous>, transform_indices = @transform_5, window_bounds = array<i64: 1, 512>}, {pipeline_mode = #tpu.pipeline_mode<synchronous>, transform_indices = @transform_6, window_bounds = array<i64: 512, 768>}, {pipeline_mode = #tpu.pipeline_mode<synchronous>, transform_indices = @transform_7, window_bounds = array<i64: 1, 768>}, {transform_indices = @transform_8, window_bounds = array<i64: 2, 1, 384>}, {transform_indices = @transform_9, window_bounds = array<i64: 2, 4, 384>}]} {
    %c0 = arith.constant 0 : index
    %0 = memref.load %arg1[%c0] : memref<2xf32, #tpu.memory_space<smem>>
    %c1 = arith.constant 1 : index
    %1 = memref.load %arg1[%c1] : memref<2xf32, #tpu.memory_space<smem>>
    %c0_0 = arith.constant 0 : index
    %c0_1 = arith.constant 0 : index
    %c0_2 = arith.constant 0 : index
    %2 = vector.load %arg2[%c0_0, %c0_1, %c0_2] : memref<2x16x128xf32, #tpu.memory_space<vmem>>, vector<2x16x128xf32>
    %3 = vector.shape_cast %2 : vector<2x16x128xf32> to vector<32x128xf32>
    %c0_3 = arith.constant 0 : index
    %c0_4 = arith.constant 0 : index
    %4 = vector.load %arg3[%c0_3, %c0_4] : memref<128x128xf32, #tpu.memory_space<vmem>>, vector<128x128xf32>
    %cst = arith.constant dense<0.000000e+00> : vector<32x128xf32>
    %5 = tpu.matmul %3, %4, %cst {dimension_numbers = #tpu.dot_dimension_numbers<[1], [0], [0], [1], [0, 0, 1, 1], [], []>} : vector<32x128xf32>, vector<128x128xf32>, vector<32x128xf32> -> vector<32x128xf32>
    %c0_5 = arith.constant 0 : index
    %c0_6 = arith.constant 0 : index
    %6 = vector.load %arg4[%c0_5, %c0_6] : memref<1x128xf32, #tpu.memory_space<vmem>>, vector<1x128xf32>
    %7 = vector.broadcast %6 : vector<1x128xf32> to vector<32x128xf32>
    %8 = arith.addf %5, %7 : vector<32x128xf32>
    %cst_7 = arith.constant 9.99999997E-7 : f32
    %9 = vector.broadcast %cst_7 : f32 to vector<32x128xf32>
    %10 = arith.maximumf %8, %9 : vector<32x128xf32>
    %11 = vector.broadcast %0 : f32 to vector<32x128xf32>
    %12 = math.powf %10, %11 : vector<32x128xf32>
    %13 = vector.shape_cast %12 : vector<32x128xf32> to vector<8x4x128xf32>
    %cst_8 = arith.constant dense<0.000000e+00> : vector<8x128xf32>
    %14 = vector.multi_reduction <add>, %13, %cst_8 [1] : vector<8x4x128xf32> to vector<8x128xf32>
    %cst_9 = arith.constant 4.000000e+00 : f32
    %15 = vector.broadcast %cst_9 : f32 to vector<8x128xf32>
    %16 = arith.divf %14, %15 : vector<8x128xf32>
    %17 = vector.broadcast %1 : f32 to vector<8x128xf32>
    %18 = math.powf %16, %17 : vector<8x128xf32>
    %c0_10 = arith.constant 0 : index
    %c0_11 = arith.constant 0 : index
    %19 = vector.load %arg5[%c0_10, %c0_11] : memref<128x512xf32, #tpu.memory_space<vmem>>, vector<128x512xf32>
    %cst_12 = arith.constant dense<0.000000e+00> : vector<8x512xf32>
    %20 = tpu.matmul %18, %19, %cst_12 {dimension_numbers = #tpu.dot_dimension_numbers<[1], [0], [0], [1], [0, 0, 1, 1], [], []>} : vector<8x128xf32>, vector<128x512xf32>, vector<8x512xf32> -> vector<8x512xf32>
    %c0_13 = arith.constant 0 : index
    %c0_14 = arith.constant 0 : index
    %21 = vector.load %arg6[%c0_13, %c0_14] : memref<1x512xf32, #tpu.memory_space<vmem>>, vector<1x512xf32>
    %22 = vector.broadcast %21 : vector<1x512xf32> to vector<8x512xf32>
    %23 = arith.addf %20, %22 : vector<8x512xf32>
    %cst_15 = arith.constant 0.000000e+00 : f32
    %24 = vector.broadcast %cst_15 : f32 to vector<8x512xf32>
    %25 = arith.maximumf %23, %24 : vector<8x512xf32>
    %c0_16 = arith.constant 0 : index
    %c0_17 = arith.constant 0 : index
    %26 = vector.load %arg7[%c0_16, %c0_17] : memref<512x768xf32, #tpu.memory_space<vmem>>, vector<512x768xf32>
    %cst_18 = arith.constant dense<0.000000e+00> : vector<8x768xf32>
    %27 = tpu.matmul %25, %26, %cst_18 {dimension_numbers = #tpu.dot_dimension_numbers<[1], [0], [0], [1], [0, 0, 1, 1], [], []>} : vector<8x512xf32>, vector<512x768xf32>, vector<8x768xf32> -> vector<8x768xf32>
    %c0_19 = arith.constant 0 : index
    %c0_20 = arith.constant 0 : index
    %28 = vector.load %arg8[%c0_19, %c0_20] : memref<1x768xf32, #tpu.memory_space<vmem>>, vector<1x768xf32>
    %29 = vector.broadcast %28 : vector<1x768xf32> to vector<8x768xf32>
    %30 = arith.addf %27, %29 : vector<8x768xf32>
    %31 = vector.extract_strided_slice %30 {offsets = [0, 0], sizes = [8, 384], strides = [1, 1]} : vector<8x768xf32> to vector<8x384xf32>
    %32 = math.tanh %31 : vector<8x384xf32>
    %33 = vector.shape_cast %32 : vector<8x384xf32> to vector<2x4x384xf32>
    %34 = vector.extract_strided_slice %30 {offsets = [0, 384], sizes = [8, 384], strides = [1, 1]} : vector<8x768xf32> to vector<8x384xf32>
    %35 = vector.shape_cast %34 : vector<8x384xf32> to vector<2x4x384xf32>
    %cst_21 = arith.constant dense<0xFF800000> : vector<2x384xf32>
    %36 = vector.multi_reduction <maximumf>, %33, %cst_21 [1] : vector<2x4x384xf32> to vector<2x384xf32>
    %37 = vector.shape_cast %36 : vector<2x384xf32> to vector<2x1x384xf32>
    %38 = vector.broadcast %37 : vector<2x1x384xf32> to vector<2x4x384xf32>
    %39 = arith.subf %33, %38 : vector<2x4x384xf32>
    %40 = math.exp %39 : vector<2x4x384xf32>
    %cst_22 = arith.constant dense<0.000000e+00> : vector<2x384xf32>
    %41 = vector.multi_reduction <add>, %40, %cst_22 [1] : vector<2x4x384xf32> to vector<2x384xf32>
    %42 = vector.shape_cast %41 : vector<2x384xf32> to vector<2x1x384xf32>
    %43 = tpu.reciprocal %42 {approx = true} : vector<2x1x384xf32> -> vector<2x1x384xf32>
    %44 = vector.broadcast %43 : vector<2x1x384xf32> to vector<2x4x384xf32>
    %45 = arith.mulf %40, %44 : vector<2x4x384xf32>
    %46 = arith.negf %35 : vector<2x4x384xf32>
    %47 = math.exp %46 : vector<2x4x384xf32>
    %cst_23 = arith.constant 1.000000e+00 : f32
    %48 = vector.broadcast %cst_23 : f32 to vector<2x4x384xf32>
    %49 = arith.addf %48, %47 : vector<2x4x384xf32>
    %50 = arith.divf %48, %49 : vector<2x4x384xf32>
    %51 = arith.mulf %50, %45 : vector<2x4x384xf32>
    %cst_24 = arith.constant dense<0.000000e+00> : vector<2x384xf32>
    %52 = vector.multi_reduction <add>, %51, %cst_24 [1] : vector<2x4x384xf32> to vector<2x384xf32>
    %53 = vector.shape_cast %52 : vector<2x384xf32> to vector<2x1x384xf32>
    %c0_25 = arith.constant 0 : index
    %c0_26 = arith.constant 0 : index
    %c0_27 = arith.constant 0 : index
    %54 = vector.load %arg9[%c0_25, %c0_26, %c0_27] : memref<2x1x384xf32, #tpu.memory_space<vmem>>, vector<2x1x384xf32>
    tpu.vector_store %arg9[%c0_25, %c0_26, %c0_27], %53 {strides = array<i32>} : memref<2x1x384xf32, #tpu.memory_space<vmem>>, vector<2x1x384xf32>,
    %c0_28 = arith.constant 0 : index
    %c0_29 = arith.constant 0 : index
    %c0_30 = arith.constant 0 : index
    %55 = vector.load %arg10[%c0_28, %c0_29, %c0_30] : memref<2x4x384xf32, #tpu.memory_space<vmem>>, vector<2x4x384xf32>
    tpu.vector_store %arg10[%c0_28, %c0_29, %c0_30], %35 {strides = array<i32>} : memref<2x4x384xf32, #tpu.memory_space<vmem>>, vector<2x4x384xf32>,
    return
  }
  func.func @transform_0(%arg0: i32) -> i32 {
    %c0_i32 = arith.constant 0 : i32
    %c0_i32_0 = arith.constant 0 : i32
    return %c0_i32 : i32
  }
  func.func @transform_1(%arg0: i32) -> (i32, i32, i32) {
    %c0_i32 = arith.constant 0 : i32
    %c0_i32_0 = arith.constant 0 : i32
    %c0_i32_1 = arith.constant 0 : i32
    return %arg0, %c0_i32, %c0_i32_0 : i32, i32, i32
  }
  func.func @transform_2(%arg0: i32) -> (i32, i32) {
    %c0_i32 = arith.constant 0 : i32
    %c0_i32_0 = arith.constant 0 : i32
    %c0_i32_1 = arith.constant 0 : i32
    return %c0_i32, %c0_i32_0 : i32, i32
  }
  func.func @transform_3(%arg0: i32) -> (i32, i32) {
    %c0_i32 = arith.constant 0 : i32
    %c0_i32_0 = arith.constant 0 : i32
    %c0_i32_1 = arith.constant 0 : i32
    return %c0_i32, %c0_i32_0 : i32, i32
  }
  func.func @transform_4(%arg0: i32) -> (i32, i32) {
    %c0_i32 = arith.constant 0 : i32
    %c0_i32_0 = arith.constant 0 : i32
    %c0_i32_1 = arith.constant 0 : i32
    return %c0_i32, %c0_i32_0 : i32, i32
  }
  func.func @transform_5(%arg0: i32) -> (i32, i32) {
    %c0_i32 = arith.constant 0 : i32
    %c0_i32_0 = arith.constant 0 : i32
    %c0_i32_1 = arith.constant 0 : i32
    return %c0_i32, %c0_i32_0 : i32, i32
  }
  func.func @transform_6(%arg0: i32) -> (i32, i32) {
    %c0_i32 = arith.constant 0 : i32
    %c0_i32_0 = arith.constant 0 : i32
    %c0_i32_1 = arith.constant 0 : i32
    return %c0_i32, %c0_i32_0 : i32, i32
  }
  func.func @transform_7(%arg0: i32) -> (i32, i32) {
    %c0_i32 = arith.constant 0 : i32
    %c0_i32_0 = arith.constant 0 : i32
    %c0_i32_1 = arith.constant 0 : i32
    return %c0_i32, %c0_i32_0 : i32, i32
  }
  func.func @transform_8(%arg0: i32) -> (i32, i32, i32) {
    %c0_i32 = arith.constant 0 : i32
    %c0_i32_0 = arith.constant 0 : i32
    %c0_i32_1 = arith.constant 0 : i32
    return %arg0, %c0_i32, %c0_i32_0 : i32, i32, i32
  }
  func.func @transform_9(%arg0: i32) -> (i32, i32, i32) {
    %c0_i32 = arith.constant 0 : i32
    %c0_i32_0 = arith.constant 0 : i32
    %c0_i32_1 = arith.constant 0 : i32
    return %arg0, %c0_i32, %c0_i32_0 : i32, i32, i32
  }
}

</mosaic_0001>

<llo_original>
// kernel: tpu_custom_call.1
$region0: #{tpu_custom_call.1}
  #allocation0 [shape = 'u32[]', space=smem, size = 0x4, offset = 0x4, fixed_abs, tag = 'smem constant byte address 0x4 - core index']
  #allocation1 [shape = 'u32[72,128]{1,0:T(1,128)}', space=vmem, size = 0x9000, scoped, tag = 'internal scratch']
  %s0 = inlined_call_operand.hbm [shape: f32[2], index: 0, kind: input, shape index: {}]
  %s1 = inlined_call_operand.hbm [shape: f32[2,16,128], index: 1, kind: input, shape index: {}]
  %s2 = inlined_call_operand.hbm [shape: f32[128,128], index: 2, kind: input, shape index: {}]
  %s3 = inlined_call_operand.hbm [shape: f32[1,128], index: 3, kind: input, shape index: {}]
  %s4 = inlined_call_operand.hbm [shape: f32[128,512], index: 4, kind: input, shape index: {}]
  %s5 = inlined_call_operand.hbm [shape: f32[1,512], index: 5, kind: input, shape index: {}]
  %s6 = inlined_call_operand.hbm [shape: f32[512,768], index: 6, kind: input, shape index: {}]
  %s7 = inlined_call_operand.hbm [shape: f32[1,768], index: 7, kind: input, shape index: {}]
  %s8 = inlined_call_operand.hbm [shape: f32[2,1,384], index: 8, kind: output, shape index: {0}]
  %s9 = inlined_call_operand.hbm [shape: f32[2,4,384], index: 9, kind: output, shape index: {1}]
  %10 = xla_tuple %s8, %s9
  %s11 = sld [smem:[#allocation0]]
  $region82: #{tpu_custom_call.1} parent=0
    _
  %s13 = ssub.s32 1, %s11
  %s14 = scalar_select 0, %s13, %s11
  $region1: #{tpu_custom_call.1} parent=0
    #allocation2 [shape = 'u8[512]{0}', space=smem, size = 0x200, scoped, tag = 'input window, operand 0, single buffered']
    #allocation3 [shape = 's32[1]{0}', space=sflag, size = 0x4, scoped, tag = 'scoped memory for tpu_custom_call.1']
    #allocation4 [shape = 's32[1]{0}', space=sflag, size = 0x4, scoped, tag = 'scoped memory for tpu_custom_call.1']
    #allocation5 [shape = 's32[1]{0}', space=sflag, size = 0x4, scoped, tag = 'scoped memory for tpu_custom_call.1']
    #allocation6 [shape = 'u8[16384]{0}', space=vmem, size = 0x4000, scoped, tag = 'input window, operand 1, single buffered']
    #allocation7 [shape = 'u8[65536]{0}', space=vmem, size = 0x10000, scoped, tag = 'input window, operand 2, single buffered']
    #allocation8 [shape = 's32[1]{0}', space=sflag, size = 0x4, scoped, tag = 'scoped memory for tpu_custom_call.1']
    #allocation9 [shape = 'u8[512]{0}', space=vmem, size = 0x400, scoped, tag = 'input window, operand 3, single buffered']
    #allocation10 [shape = 'u8[262144]{0}', space=vmem, size = 0x40000, scoped, tag = 'input window, operand 4, single buffered']
    #allocation11 [shape = 's32[1]{0}', space=sflag, size = 0x4, scoped, tag = 'scoped memory for tpu_custom_call.1']
    #allocation12 [shape = 'u8[2048]{0}', space=vmem, size = 0x800, scoped, tag = 'input window, operand 5, single buffered']
    #allocation13 [shape = 'u8[1572864]{0}', space=vmem, size = 0x180000, scoped, tag = 'input window, operand 6, single buffered']
    #allocation14 [shape = 's32[1]{0}', space=sflag, size = 0x4, scoped, tag = 'scoped memory for tpu_custom_call.1']
    #allocation15 [shape = 'u8[3072]{0}', space=vmem, size = 0xc00, scoped, tag = 'input window, operand 7, single buffered']
    #allocation16 [shape = 'u8[3072]{0}', space=vmem, size = 0xc00, scoped, tag = 'output window, operand 0, single buffered']
    #allocation17 [shape = 'u8[12288]{0}', space=vmem, size = 0x3000, scoped, tag = 'output window, operand 1, single buffered']
    #allocation18 [shape = 's32[1]{0}', space=sflag, size = 0x4, scoped, tag = 'scoped memory for tpu_custom_call.1']
    %15 = vsyncpa [#allocation5], 0
    %16 = vsyncpa [#allocation3], 0
    %17 = vsyncpa [#allocation8], 0
    %18 = vsyncpa [#allocation11], 0
    %19 = vsyncpa [#allocation14], 0
    %20 = vsyncpa [#allocation4], 0
    %21 = vsyncpa [#allocation18], 0
    // Predicated region
    $region2: #{tpu_custom_call.1} parent=1 // pred_check
      _
    $region3: #{tpu_custom_call.1} parent=1 // pred_check_branch
      %23 = sbr.rel (0) target = $region5
    $region4: #{tpu_custom_call.1} parent=1 // pred_region
      %25 = vsyncadd [#allocation5], 0
      %s27 = sshll.u32 %s0, 4
      %s28 = int_to_ptr.hbm [resolvable:$true] %s27
      %30 = dma.hbm_to_smem %s28, 16, [#allocation2], [#allocation5]
    $region5: #{tpu_custom_call.1} parent=1 // pred_fallthru
      _
    // Predicated region
    $region6: #{tpu_custom_call.1} parent=1 // pred_check
      _
    $region7: #{tpu_custom_call.1} parent=1 // pred_check_branch
      %32 = sbr.rel (0) target = $region9
    $region8: #{tpu_custom_call.1} parent=1 // pred_region
      %34 = vsyncadd [#allocation3], 0
      %s35 = sshll.u32 %s1, 4
      %s36 = int_to_ptr.hbm [resolvable:$true] %s35
      %s37 = sshll.u32 [#allocation6], 4
      %s38 = int_to_ptr.vmem [resolvable:$true] %s37
      %43 = dma.hbm_to_vmem [thread:$0]  %s36, 512, %s38, [#allocation3], 128, 128, 8
    $region9: #{tpu_custom_call.1} parent=1 // pred_fallthru
      _
    // Predicated region
    $region10: #{tpu_custom_call.1} parent=1 // pred_check
      _
    $region11: #{tpu_custom_call.1} parent=1 // pred_check_branch
      %45 = sbr.rel (0) target = $region13
    $region12: #{tpu_custom_call.1} parent=1 // pred_region
      %47 = vsyncadd [#allocation8], 0
      %s48 = sshll.u32 %s2, 4
      %s49 = int_to_ptr.hbm [resolvable:$true] %s48
      %s50 = sshll.u32 [#allocation7], 4
      %s51 = int_to_ptr.vmem [resolvable:$true] %s50
      %56 = dma.hbm_to_vmem [thread:$0]  %s49, 2048, %s51, [#allocation8], 128, 128, 8
    $region13: #{tpu_custom_call.1} parent=1 // pred_fallthru
      _
    // Predicated region
    $region14: #{tpu_custom_call.1} parent=1 // pred_check
      _
    $region15: #{tpu_custom_call.1} parent=1 // pred_check_branch
      %58 = sbr.rel (0) target = $region17
    $region16: #{tpu_custom_call.1} parent=1 // pred_region
      %60 = vsyncadd [#allocation8], 0
      %s62 = sshll.u32 %s3, 4
      %s63 = int_to_ptr.hbm [resolvable:$true] %s62
      %s64 = sshll.u32 [#allocation9], 4
      %s65 = int_to_ptr.vmem [resolvable:$true] %s64
      %67 = dma.hbm_to_vmem [thread:$0]  %s63, 16, %s65, [#allocation8]
    $region17: #{tpu_custom_call.1} parent=1 // pred_fallthru
      _
    // Predicated region
    $region18: #{tpu_custom_call.1} parent=1 // pred_check
      _
    $region19: #{tpu_custom_call.1} parent=1 // pred_check_branch
      %69 = sbr.rel (0) target = $region21
    $region20: #{tpu_custom_call.1} parent=1 // pred_region
      %71 = vsyncadd [#allocation11], 0
      %s72 = sshll.u32 %s4, 4
      %s73 = int_to_ptr.hbm [resolvable:$true] %s72
      %s74 = sshll.u32 [#allocation10], 4
      %s75 = int_to_ptr.vmem [resolvable:$true] %s74
      %80 = dma.hbm_to_vmem [thread:$0]  %s73, 8192, %s75, [#allocation11], 512, 512, 32
    $region21: #{tpu_custom_call.1} parent=1 // pred_fallthru
      _
    // Predicated region
    $region22: #{tpu_custom_call.1} parent=1 // pred_check
      _
    $region23: #{tpu_custom_call.1} parent=1 // pred_check_branch
      %82 = sbr.rel (0) target = $region25
    $region24: #{tpu_custom_call.1} parent=1 // pred_region
      %84 = vsyncadd [#allocation11], 0
      %s86 = sshll.u32 %s5, 4
      %s87 = int_to_ptr.hbm [resolvable:$true] %s86
      %s88 = sshll.u32 [#allocation12], 4
      %s89 = int_to_ptr.vmem [resolvable:$true] %s88
      %91 = dma.hbm_to_vmem [thread:$0]  %s87, 64, %s89, [#allocation11]
    $region25: #{tpu_custom_call.1} parent=1 // pred_fallthru
      _
    // Predicated region
    $region26: #{tpu_custom_call.1} parent=1 // pred_check
      _
    $region27: #{tpu_custom_call.1} parent=1 // pred_check_branch
      %93 = sbr.rel (0) target = $region29
    $region28: #{tpu_custom_call.1} parent=1 // pred_region
      %95 = vsyncadd [#allocation14], 0
      %s96 = sshll.u32 %s6, 4
      %s97 = int_to_ptr.hbm [resolvable:$true] %s96
      %s98 = sshll.u32 [#allocation13], 4
      %s99 = int_to_ptr.vmem [resolvable:$true] %s98
      %104 = dma.hbm_to_vmem [thread:$0]  %s97, 49152, %s99, [#allocation14], 768, 768, 48
    $region29: #{tpu_custom_call.1} parent=1 // pred_fallthru
      _
    // Predicated region
    $region30: #{tpu_custom_call.1} parent=1 // pred_check
      _
    $region31: #{tpu_custom_call.1} parent=1 // pred_check_branch
      %106 = sbr.rel (0) target = $region33
    $region32: #{tpu_custom_call.1} parent=1 // pred_region
      %108 = vsyncadd [#allocation14], 0
      %s110 = sshll.u32 %s7, 4
      %s111 = int_to_ptr.hbm [resolvable:$true] %s110
      %s112 = sshll.u32 [#allocation15], 4
      %s113 = int_to_ptr.vmem [resolvable:$true] %s112
      %115 = dma.hbm_to_vmem [thread:$0]  %s111, 96, %s113, [#allocation14]
    $region33: #{tpu_custom_call.1} parent=1 // pred_fallthru
      _
    // Predicated region
    $region34: #{tpu_custom_call.1} parent=1 // pred_check
      _
    $region35: #{tpu_custom_call.1} parent=1 // pred_check_branch
      %117 = sbr.rel (0) target = $region37
    $region36: #{tpu_custom_call.1} parent=1 // pred_region
      %119 = dma.done [#allocation5], 16
    $region37: #{tpu_custom_call.1} parent=1 // pred_fallthru
      _
    // Predicated region
    $region38: #{tpu_custom_call.1} parent=1 // pred_check
      _
    $region39: #{tpu_custom_call.1} parent=1 // pred_check_branch
      %121 = sbr.rel (0) target = $region41
    $region40: #{tpu_custom_call.1} parent=1 // pred_region
      %123 = dma.done [#allocation3], 512
    $region41: #{tpu_custom_call.1} parent=1 // pred_fallthru
      _
    // Predicated region
    $region42: #{tpu_custom_call.1} parent=1 // pred_check
      _
    $region43: #{tpu_custom_call.1} parent=1 // pred_check_branch
      %125 = sbr.rel (0) target = $region45
    $region44: #{tpu_custom_call.1} parent=1 // pred_region
      %127 = dma.done [#allocation8], 2048
    $region45: #{tpu_custom_call.1} parent=1 // pred_fallthru
      _
    // Predicated region
    $region46: #{tpu_custom_call.1} parent=1 // pred_check
      _
    $region47: #{tpu_custom_call.1} parent=1 // pred_check_branch
      %129 = sbr.rel (0) target = $region49
    $region48: #{tpu_custom_call.1} parent=1 // pred_region
      %131 = dma.done [#allocation8], 16
    $region49: #{tpu_custom_call.1} parent=1 // pred_fallthru
      _
    // Predicated region
    $region50: #{tpu_custom_call.1} parent=1 // pred_check
      _
    $region51: #{tpu_custom_call.1} parent=1 // pred_check_branch
      %133 = sbr.rel (0) target = $region53
    $region52: #{tpu_custom_call.1} parent=1 // pred_region
      %135 = dma.done [#allocation11], 8192
    $region53: #{tpu_custom_call.1} parent=1 // pred_fallthru
      _
    // Predicated region
    $region54: #{tpu_custom_call.1} parent=1 // pred_check
      _
    $region55: #{tpu_custom_call.1} parent=1 // pred_check_branch
      %137 = sbr.rel (0) target = $region57
    $region56: #{tpu_custom_call.1} parent=1 // pred_region
      %139 = dma.done [#allocation11], 64
    $region57: #{tpu_custom_call.1} parent=1 // pred_fallthru
      _
    // Predicated region
    $region58: #{tpu_custom_call.1} parent=1 // pred_check
      _
    $region59: #{tpu_custom_call.1} parent=1 // pred_check_branch
      %141 = sbr.rel (0) target = $region61
    $region60: #{tpu_custom_call.1} parent=1 // pred_region
      %143 = dma.done [#allocation14], 49152
    $region61: #{tpu_custom_call.1} parent=1 // pred_fallthru
      _
    // Predicated region
    $region62: #{tpu_custom_call.1} parent=1 // pred_check
      _
    $region63: #{tpu_custom_call.1} parent=1 // pred_check_branch
      %145 = sbr.rel (0) target = $region65
    $region64: #{tpu_custom_call.1} parent=1 // pred_region
      %147 = dma.done [#allocation14], 96
    $region65: #{tpu_custom_call.1} parent=1 // pred_fallthru
      _
    %148 = sfence
    %s149 = sld [smem:[#allocation2]]
    %s150 = sld [smem:[#allocation2 + $0x1]]
    %v151 = vld [vmem:[#allocation6] sm:$0xff]
    %v152 = vld [vmem:[#allocation6 + $0x8] sm:$0xff]
    %v153 = vld [vmem:[#allocation6 + $0x10] sm:$0xff]
    %v154 = vld [vmem:[#allocation6 + $0x18] sm:$0xff]
    %v155 = vld [vmem:[#allocation7] sm:$0xff]
    %v156 = vld [vmem:[#allocation7 + $0x8] sm:$0xff]
    %v157 = vld [vmem:[#allocation7 + $0x10] sm:$0xff]
    %v158 = vld [vmem:[#allocation7 + $0x18] sm:$0xff]
    %v159 = vld [vmem:[#allocation7 + $0x20] sm:$0xff]
    %v160 = vld [vmem:[#allocation7 + $0x28] sm:$0xff]
    %v161 = vld [vmem:[#allocation7 + $0x30] sm:$0xff]
    %v162 = vld [vmem:[#allocation7 + $0x38] sm:$0xff]
    %v163 = vld [vmem:[#allocation7 + $0x40] sm:$0xff]
    %v164 = vld [vmem:[#allocation7 + $0x48] sm:$0xff]
    %v165 = vld [vmem:[#allocation7 + $0x50] sm:$0xff]
    %v166 = vld [vmem:[#allocation7 + $0x58] sm:$0xff]
    %v167 = vld [vmem:[#allocation7 + $0x60] sm:$0xff]
    %v168 = vld [vmem:[#allocation7 + $0x68] sm:$0xff]
    %v169 = vld [vmem:[#allocation7 + $0x70] sm:$0xff]
    %v170 = vld [vmem:[#allocation7 + $0x78] sm:$0xff]
    %v171 = vld [vmem:[#allocation9] sm:$0x1]
    %v173 = vperm.slane %v171, 0
    %175 = vmatpush.msra.mxu0 %v170
    %176 = vmatpush.msra.mxu0 %v169
    %177 = vmatpush.msra.mxu0 %v168
    %178 = vmatpush.msra.mxu0 %v167
    %179 = vmatpush.msra.mxu0 %v166
    %180 = vmatpush.msra.mxu0 %v165
    %181 = vmatpush.msra.mxu0 %v164
    %182 = vmatpush.msra.mxu0 %v163
    %183 = vmatpush.msra.mxu0 %v162
    %184 = vmatpush.msra.mxu0 %v161
    %185 = vmatpush.msra.mxu0 %v160
    %186 = vmatpush.msra.mxu0 %v159
    %187 = vmatpush.msra.mxu0 %v158
    %188 = vmatpush.msra.mxu0 %v157
    %189 = vmatpush.msra.mxu0 %v156
    %190 = vmatpush.msra.mxu0 %v155
    %191 = vmatmul.f32.gmra.mxu0 %v151
    %v192 = vpop.f32.mrf.mxu0
    %v193 = vadd.f32 %v173, %v192
    %194 = vmatmul.f32.gmra.mxu0 %v152
    %v195 = vpop.f32.mrf.mxu0
    %v196 = vadd.f32 %v173, %v195
    %197 = vmatmul.f32.gmra.mxu0 %v153
    %v198 = vpop.f32.mrf.mxu0
    %v199 = vadd.f32 %v173, %v198
    %200 = vmatmul.f32.gmra.mxu0 %v154
    %v201 = vpop.f32.mrf.mxu0
    %v202 = vadd.f32 %v173, %v201
    %203 = vdwg.mxu0
    %v204 = vmax.f32 %v193, 1e-06
    %v205 = vmax.f32 %v196, 1e-06
    %v206 = vmax.f32 %v199, 1e-06
    %v207 = vmax.f32 %v202, 1e-06
    %v208 = vstv %s149
    %v209 = vpow.f32 %v204, %v208
    %v210 = vpow.f32 %v205, %v208
    %v211 = vpow.f32 %v206, %v208
    %v212 = vpow.f32 %v207, %v208
    %v217 = vrot.slane %v209, 4
    %v218 = vrot.slane %v210, 4
    %v219 = vrot.slane %v211, 4
    %v220 = vrot.slane %v212, 4
    %vm225 = vcmask 1043456
    %v226 = vsel %vm225, %v209, 0.0
    %v227 = vrot.slane %v226, 4
    %v228 = vadd.f32 %v226, %v227
    %v229 = vrot.slane %v228, 2
    %v230 = vadd.f32 %v228, %v229
    %v231 = vrot.slane %v230, 1
    %v232 = vadd.f32 %v230, %v231
    %v233 = vsel %vm225, %v217, 0.0
    %v234 = vrot.slane %v233, 4
    %v235 = vadd.f32 %v233, %v234
    %v236 = vrot.slane %v235, 2
    %v237 = vadd.f32 %v235, %v236
    %v238 = vrot.slane %v237, 1
    %v239 = vadd.f32 %v237, %v238
    %v240 = vsel %vm225, %v210, 0.0
    %v241 = vrot.slane %v240, 4
    %v242 = vadd.f32 %v240, %v241
    %v243 = vrot.slane %v242, 2
    %v244 = vadd.f32 %v242, %v243
    %v245 = vrot.slane %v244, 1
    %v246 = vadd.f32 %v244, %v245
    %v247 = vsel %vm225, %v218, 0.0
    %v248 = vrot.slane %v247, 4
    %v249 = vadd.f32 %v247, %v248
    %v250 = vrot.slane %v249, 2
    %v251 = vadd.f32 %v249, %v250
    %v252 = vrot.slane %v251, 1
    %v253 = vadd.f32 %v251, %v252
    %v254 = vsel %vm225, %v211, 0.0
    %v255 = vrot.slane %v254, 4
    %v256 = vadd.f32 %v254, %v255
    %v257 = vrot.slane %v256, 2
    %v258 = vadd.f32 %v256, %v257
    %v259 = vrot.slane %v258, 1
    %v260 = vadd.f32 %v258, %v259
    %v261 = vsel %vm225, %v219, 0.0
    %v262 = vrot.slane %v261, 4
    %v263 = vadd.f32 %v261, %v262
    %v264 = vrot.slane %v263, 2
    %v265 = vadd.f32 %v263, %v264
    %v266 = vrot.slane %v265, 1
    %v267 = vadd.f32 %v265, %v266
    %v268 = vsel %vm225, %v212, 0.0
    %v269 = vrot.slane %v268, 4
    %v270 = vadd.f32 %v268, %v269
    %v271 = vrot.slane %v270, 2
    %v272 = vadd.f32 %v270, %v271
    %v273 = vrot.slane %v272, 1
    %v274 = vadd.f32 %v272, %v273
    %v275 = vsel %vm225, %v220, 0.0
    %v276 = vrot.slane %v275, 4
    %v277 = vadd.f32 %v275, %v276
    %v278 = vrot.slane %v277, 2
    %v279 = vadd.f32 %v277, %v278
    %v280 = vrot.slane %v279, 1
    %v281 = vadd.f32 %v279, %v280
    %v282 = vrcp.pop 4.0
    %v283 = vmul.f32 4.0, %v282
    %v284 = vsub.f32 1.0, %v283
    %v285 = vmul.f32 %v282, %v284
    %v286 = vadd.f32 %v282, %v285
    %vm287 = vweird.f32 %v282
    %v288 = vsel %vm287, %v282, %v286
    %v289 = vmul.f32 %v232, %v288
    %v290 = vmul.f32 %v239, %v288
    %v291 = vmul.f32 %v246, %v288
    %v292 = vmul.f32 %v253, %v288
    %v293 = vmul.f32 %v260, %v288
    %v294 = vmul.f32 %v267, %v288
    %v295 = vmul.f32 %v274, %v288
    %v296 = vmul.f32 %v281, %v288
    %v297 = vstv %s150
    %v298 = vpow.f32 %v289, %v297
    %v299 = vpow.f32 %v290, %v297
    %v300 = vpow.f32 %v291, %v297
    %v301 = vpow.f32 %v292, %v297
    %v302 = vpow.f32 %v293, %v297
    %v303 = vpow.f32 %v294, %v297
    %v304 = vpow.f32 %v295, %v297
    %v305 = vpow.f32 %v296, %v297
    %v306 = vld [vmem:[#allocation10] sm:$0xff]
    %v307 = vld [vmem:[#allocation10 + $0x8] sm:$0xff]
    %v308 = vld [vmem:[#allocation10 + $0x10] sm:$0xff]
    %v309 = vld [vmem:[#allocation10 + $0x18] sm:$0xff]
    %v310 = vld [vmem:[#allocation10 + $0x20] sm:$0xff]
    %v311 = vld [vmem:[#allocation10 + $0x28] sm:$0xff]
    %v312 = vld [vmem:[#allocation10 + $0x30] sm:$0xff]
    %v313 = vld [vmem:[#allocation10 + $0x38] sm:$0xff]
    %v314 = vld [vmem:[#allocation10 + $0x40] sm:$0xff]
    %v315 = vld [vmem:[#allocation10 + $0x48] sm:$0xff]
    %v316 = vld [vmem:[#allocation10 + $0x50] sm:$0xff]
    %v317 = vld [vmem:[#allocation10 + $0x58] sm:$0xff]
    %v318 = vld [vmem:[#allocation10 + $0x60] sm:$0xff]
    %v319 = vld [vmem:[#allocation10 + $0x68] sm:$0xff]
    %v320 = vld [vmem:[#allocation10 + $0x70] sm:$0xff]
    %v321 = vld [vmem:[#allocation10 + $0x78] sm:$0xff]
    %v322 = vld [vmem:[#allocation10 + $0x80] sm:$0xff]
    %v323 = vld [vmem:[#allocation10 + $0x88] sm:$0xff]
    %v324 = vld [vmem:[#allocation10 + $0x90] sm:$0xff]
    %v325 = vld [vmem:[#allocation10 + $0x98] sm:$0xff]
    %v326 = vld [vmem:[#allocation10 + $0xa0] sm:$0xff]
    %v327 = vld [vmem:[#allocation10 + $0xa8] sm:$0xff]
    %v328 = vld [vmem:[#allocation10 + $0xb0] sm:$0xff]
    %v329 = vld [vmem:[#allocation10 + $0xb8] sm:$0xff]
    %v330 = vld [vmem:[#allocation10 + $0xc0] sm:$0xff]
    %v331 = vld [vmem:[#allocation10 + $0xc8] sm:$0xff]
    %v332 = vld [vmem:[#allocation10 + $0xd0] sm:$0xff]
    %v333 = vld [vmem:[#allocation10 + $0xd8] sm:$0xff]
    %v334 = vld [vmem:[#allocation10 + $0xe0] sm:$0xff]
    %v335 = vld [vmem:[#allocation10 + $0xe8] sm:$0xff]
    %v336 = vld [vmem:[#allocation10 + $0xf0] sm:$0xff]
    %v337 = vld [vmem:[#allocation10 + $0xf8] sm:$0xff]
    %v338 = vld [vmem:[#allocation10 + $0x100] sm:$0xff]
    %v339 = vld [vmem:[#allocation10 + $0x108] sm:$0xff]
    %v340 = vld [vmem:[#allocation10 + $0x110] sm:$0xff]
    %v341 = vld [vmem:[#allocation10 + $0x118] sm:$0xff]
    %v342 = vld [vmem:[#allocation10 + $0x120] sm:$0xff]
    %v343 = vld [vmem:[#allocation10 + $0x128] sm:$0xff]
    %v344 = vld [vmem:[#allocation10 + $0x130] sm:$0xff]
    %v345 = vld [vmem:[#allocation10 + $0x138] sm:$0xff]
    %v346 = vld [vmem:[#allocation10 + $0x140] sm:$0xff]
    %v347 = vld [vmem:[#allocation10 + $0x148] sm:$0xff]
    %v348 = vld [vmem:[#allocation10 + $0x150] sm:$0xff]
    %v349 = vld [vmem:[#allocation10 + $0x158] sm:$0xff]
    %v350 = vld [vmem:[#allocation10 + $0x160] sm:$0xff]
    %v351 = vld [vmem:[#allocation10 + $0x168] sm:$0xff]
    %v352 = vld [vmem:[#allocation10 + $0x170] sm:$0xff]
    %v353 = vld [vmem:[#allocation10 + $0x178] sm:$0xff]
    %v354 = vld [vmem:[#allocation10 + $0x180] sm:$0xff]
    %v355 = vld [vmem:[#allocation10 + $0x188] sm:$0xff]
    %v356 = vld [vmem:[#allocation10 + $0x190] sm:$0xff]
    %v357 = vld [vmem:[#allocation10 + $0x198] sm:$0xff]
    %v358 = vld [vmem:[#allocation10 + $0x1a0] sm:$0xff]
    %v359 = vld [vmem:[#allocation10 + $0x1a8] sm:$0xff]
    %v360 = vld [vmem:[#allocation10 + $0x1b0] sm:$0xff]
    %v361 = vld [vmem:[#allocation10 + $0x1b8] sm:$0xff]
    %v362 = vld [vmem:[#allocation10 + $0x1c0] sm:$0xff]
    %v363 = vld [vmem:[#allocation10 + $0x1c8] sm:$0xff]
    %v364 = vld [vmem:[#allocation10 + $0x1d0] sm:$0xff]
    %v365 = vld [vmem:[#allocation10 + $0x1d8] sm:$0xff]
    %v366 = vld [vmem:[#allocation10 + $0x1e0] sm:$0xff]
    %v367 = vld [vmem:[#allocation10 + $0x1e8] sm:$0xff]
    %v368 = vld [vmem:[#allocation10 + $0x1f0] sm:$0xff]
    %v369 = vld [vmem:[#allocation10 + $0x1f8] sm:$0xff]
    %v370 = vld [vmem:[#allocation12] sm:$0xf]
    %v372 = vperm.slane %v370, 0
    %v373 = vperm.slane %v370, 1
    %v374 = vperm.slane %v370, 2
    %v375 = vperm.slane %v370, 3
    %vm388 = vcmask 1041409
    %v389 = vsel %vm388, %v299, %v298
    %vm390 = vcmask 1042434
    %v391 = vsel %vm390, %v300, %v389
    %vm392 = vcmask 1043459
    %v393 = vsel %vm392, %v301, %v391
    %vm394 = vcmask 1044484
    %v395 = vsel %vm394, %v302, %v393
    %vm396 = vcmask 1045509
    %v397 = vsel %vm396, %v303, %v395
    %vm398 = vcmask 1046534
    %v399 = vsel %vm398, %v304, %v397
    %vm400 = vcmask 1047559
    %v401 = vsel %vm400, %v305, %v399
    %403 = vmatpush.msra.mxu0 %v366
    %404 = vmatpush.msra.mxu0 %v362
    %405 = vmatpush.msra.mxu0 %v358
    %406 = vmatpush.msra.mxu0 %v354
    %407 = vmatpush.msra.mxu0 %v350
    %408 = vmatpush.msra.mxu0 %v346
    %409 = vmatpush.msra.mxu0 %v342
    %410 = vmatpush.msra.mxu0 %v338
    %411 = vmatpush.msra.mxu0 %v334
    %412 = vmatpush.msra.mxu0 %v330
    %413 = vmatpush.msra.mxu0 %v326
    %414 = vmatpush.msra.mxu0 %v322
    %415 = vmatpush.msra.mxu0 %v318
    %416 = vmatpush.msra.mxu0 %v314
    %417 = vmatpush.msra.mxu0 %v310
    %418 = vmatpush.msra.mxu0 %v306
    %419 = vmatmul.f32.gmra.mxu0 %v401
    %v420 = vpop.f32.mrf.mxu0
    %v421 = vadd.f32 %v372, %v420
    %422 = vdwg.mxu0
    %423 = vmatpush.msra.mxu0 %v367
    %424 = vmatpush.msra.mxu0 %v363
    %425 = vmatpush.msra.mxu0 %v359
    %426 = vmatpush.msra.mxu0 %v355
    %427 = vmatpush.msra.mxu0 %v351
    %428 = vmatpush.msra.mxu0 %v347
    %429 = vmatpush.msra.mxu0 %v343
    %430 = vmatpush.msra.mxu0 %v339
    %431 = vmatpush.msra.mxu0 %v335
    %432 = vmatpush.msra.mxu0 %v331
    %433 = vmatpush.msra.mxu0 %v327
    %434 = vmatpush.msra.mxu0 %v323
    %435 = vmatpush.msra.mxu0 %v319
    %436 = vmatpush.msra.mxu0 %v315
    %437 = vmatpush.msra.mxu0 %v311
    %438 = vmatpush.msra.mxu0 %v307
    %439 = vmatmul.f32.gmra.mxu0 %v401
    %v440 = vpop.f32.mrf.mxu0
    %v441 = vadd.f32 %v373, %v440
    %442 = vdwg.mxu0
    %443 = vmatpush.msra.mxu0 %v368
    %444 = vmatpush.msra.mxu0 %v364
    %445 = vmatpush.msra.mxu0 %v360
    %446 = vmatpush.msra.mxu0 %v356
    %447 = vmatpush.msra.mxu0 %v352
    %448 = vmatpush.msra.mxu0 %v348
    %449 = vmatpush.msra.mxu0 %v344
    %450 = vmatpush.msra.mxu0 %v340
    %451 = vmatpush.msra.mxu0 %v336
    %452 = vmatpush.msra.mxu0 %v332
    %453 = vmatpush.msra.mxu0 %v328
    %454 = vmatpush.msra.mxu0 %v324
    %455 = vmatpush.msra.mxu0 %v320
    %456 = vmatpush.msra.mxu0 %v316
    %457 = vmatpush.msra.mxu0 %v312
    %458 = vmatpush.msra.mxu0 %v308
    %459 = vmatmul.f32.gmra.mxu0 %v401
    %v460 = vpop.f32.mrf.mxu0
    %v461 = vadd.f32 %v374, %v460
    %462 = vdwg.mxu0
    %463 = vmatpush.msra.mxu0 %v369
    %464 = vmatpush.msra.mxu0 %v365
    %465 = vmatpush.msra.mxu0 %v361
    %466 = vmatpush.msra.mxu0 %v357
    %467 = vmatpush.msra.mxu0 %v353
    %468 = vmatpush.msra.mxu0 %v349
    %469 = vmatpush.msra.mxu0 %v345
    %470 = vmatpush.msra.mxu0 %v341
    %471 = vmatpush.msra.mxu0 %v337
    %472 = vmatpush.msra.mxu0 %v333
    %473 = vmatpush.msra.mxu0 %v329
    %474 = vmatpush.msra.mxu0 %v325
    %475 = vmatpush.msra.mxu0 %v321
    %476 = vmatpush.msra.mxu0 %v317
    %477 = vmatpush.msra.mxu0 %v313
    %478 = vmatpush.msra.mxu0 %v309
    %479 = vmatmul.f32.gmra.mxu0 %v401
    %v480 = vpop.f32.mrf.mxu0
    %v481 = vadd.f32 %v375, %v480
    %482 = vdwg.mxu0
    %v483 = vmax.f32 %v421, 0.0
    %v484 = vmax.f32 %v441, 0.0
    %v485 = vmax.f32 %v461, 0.0
    %v486 = vmax.f32 %v481, 0.0
    %v487 = vld [vmem:[#allocation13] sm:$0xff]
    %v488 = vld [vmem:[#allocation13 + $0x8] sm:$0xff]
    %v489 = vld [vmem:[#allocation13 + $0x10] sm:$0xff]
    %v490 = vld [vmem:[#allocation13 + $0x18] sm:$0xff]
    %v491 = vld [vmem:[#allocation13 + $0x20] sm:$0xff]
    %v492 = vld [vmem:[#allocation13 + $0x28] sm:$0xff]
    %v493 = vld [vmem:[#allocation13 + $0x30] sm:$0xff]
    %v494 = vld [vmem:[#allocation13 + $0x38] sm:$0xff]
    %v495 = vld [vmem:[#allocation13 + $0x40] sm:$0xff]
    %v496 = vld [vmem:[#allocation13 + $0x48] sm:$0xff]
    %v497 = vld [vmem:[#allocation13 + $0x50] sm:$0xff]
    %v498 = vld [vmem:[#allocation13 + $0x58] sm:$0xff]
    %v499 = vld [vmem:[#allocation13 + $0x60] sm:$0xff]
    %v500 = vld [vmem:[#allocation13 + $0x68] sm:$0xff]
    %v501 = vld [vmem:[#allocation13 + $0x70] sm:$0xff]
    %v502 = vld [vmem:[#allocation13 + $0x78] sm:$0xff]
    %v503 = vld [vmem:[#allocation13 + $0x80] sm:$0xff]
    %v504 = vld [vmem:[#allocation13 + $0x88] sm:$0xff]
    %v505 = vld [vmem:[#allocation13 + $0x90] sm:$0xff]
    %v506 = vld [vmem:[#allocation13 + $0x98] sm:$0xff]
    %v507 = vld [vmem:[#allocation13 + $0xa0] sm:$0xff]
    %v508 = vld [vmem:[#allocation13 + $0xa8] sm:$0xff]
    %v509 = vld [vmem:[#allocation13 + $0xb0] sm:$0xff]
    %v510 = vld [vmem:[#allocation13 + $0xb8] sm:$0xff]
    %v511 = vld [vmem:[#allocation13 + $0xc0] sm:$0xff]
    %v512 = vld [vmem:[#allocation13 + $0xc8] sm:$0xff]
    %v513 = vld [vmem:[#allocation13 + $0xd0] sm:$0xff]
    %v514 = vld [vmem:[#allocation13 + $0xd8] sm:$0xff]
    %v515 = vld [vmem:[#allocation13 + $0xe0] sm:$0xff]
    %v516 = vld [vmem:[#allocation13 + $0xe8] sm:$0xff]
    %v517 = vld [vmem:[#allocation13 + $0xf0] sm:$0xff]
    %v518 = vld [vmem:[#allocation13 + $0xf8] sm:$0xff]
    %v519 = vld [vmem:[#allocation13 + $0x100] sm:$0xff]
    %v520 = vld [vmem:[#allocation13 + $0x108] sm:$0xff]
    %v521 = vld [vmem:[#allocation13 + $0x110] sm:$0xff]
    %v522 = vld [vmem:[#allocation13 + $0x118] sm:$0xff]
    %v523 = vld [vmem:[#allocation13 + $0x120] sm:$0xff]
    %v524 = vld [vmem:[#allocation13 + $0x128] sm:$0xff]
    %v525 = vld [vmem:[#allocation13 + $0x130] sm:$0xff]
    %v526 = vld [vmem:[#allocation13 + $0x138] sm:$0xff]
    %v527 = vld [vmem:[#allocation13 + $0x140] sm:$0xff]
    %v528 = vld [vmem:[#allocation13 + $0x148] sm:$0xff]
    %v529 = vld [vmem:[#allocation13 + $0x150] sm:$0xff]
    %v530 = vld [vmem:[#allocation13 + $0x158] sm:$0xff]
    %v531 = vld [vmem:[#allocation13 + $0x160] sm:$0xff]
    %v532 = vld [vmem:[#allocation13 + $0x168] sm:$0xff]
    %v533 = vld [vmem:[#allocation13 + $0x170] sm:$0xff]
    %v534 = vld [vmem:[#allocation13 + $0x178] sm:$0xff]
    %v535 = vld [vmem:[#allocation13 + $0x180] sm:$0xff]
    %v536 = vld [vmem:[#allocation13 + $0x188] sm:$0xff]
    %v537 = vld [vmem:[#allocation13 + $0x190] sm:$0xff]
    %v538 = vld [vmem:[#allocation13 + $0x198] sm:$0xff]
    %v539 = vld [vmem:[#allocation13 + $0x1a0] sm:$0xff]
    %v540 = vld [vmem:[#allocation13 + $0x1a8] sm:$0xff]
    %v541 = vld [vmem:[#allocation13 + $0x1b0] sm:$0xff]
    %v542 = vld [vmem:[#allocation13 + $0x1b8] sm:$0xff]
    %v543 = vld [vmem:[#allocation13 + $0x1c0] sm:$0xff]
    %v544 = vld [vmem:[#allocation13 + $0x1c8] sm:$0xff]
    %v545 = vld [vmem:[#allocation13 + $0x1d0] sm:$0xff]
    %v546 = vld [vmem:[#allocation13 + $0x1d8] sm:$0xff]
    %v547 = vld [vmem:[#allocation13 + $0x1e0] sm:$0xff]
    %v548 = vld [vmem:[#allocation13 + $0x1e8] sm:$0xff]
    %v549 = vld [vmem:[#allocation13 + $0x1f0] sm:$0xff]
    %v550 = vld [vmem:[#allocation13 + $0x1f8] sm:$0xff]
    %v551 = vld [vmem:[#allocation13 + $0x200] sm:$0xff]
    %v552 = vld [vmem:[#allocation13 + $0x208] sm:$0xff]
    %v553 = vld [vmem:[#allocation13 + $0x210] sm:$0xff]
    %v554 = vld [vmem:[#allocation13 + $0x218] sm:$0xff]
    %v555 = vld [vmem:[#allocation13 + $0x220] sm:$0xff]
    %v556 = vld [vmem:[#allocation13 + $0x228] sm:$0xff]
    %v557 = vld [vmem:[#allocation13 + $0x230] sm:$0xff]
    %v558 = vld [vmem:[#allocation13 + $0x238] sm:$0xff]
    %v559 = vld [vmem:[#allocation13 + $0x240] sm:$0xff]
    %v560 = vld [vmem:[#allocation13 + $0x248] sm:$0xff]
    %v561 = vld [vmem:[#allocation13 + $0x250] sm:$0xff]
    %v562 = vld [vmem:[#allocation13 + $0x258] sm:$0xff]
    %v563 = vld [vmem:[#allocation13 + $0x260] sm:$0xff]
    %v564 = vld [vmem:[#allocation13 + $0x268] sm:$0xff]
    %v565 = vld [vmem:[#allocation13 + $0x270] sm:$0xff]
    %v566 = vld [vmem:[#allocation13 + $0x278] sm:$0xff]
    %v567 = vld [vmem:[#allocation13 + $0x280] sm:$0xff]
    %v568 = vld [vmem:[#allocation13 + $0x288] sm:$0xff]
    %v569 = vld [vmem:[#allocation13 + $0x290] sm:$0xff]
    %v570 = vld [vmem:[#allocation13 + $0x298] sm:$0xff]
    %v571 = vld [vmem:[#allocation13 + $0x2a0] sm:$0xff]
    %v572 = vld [vmem:[#allocation13 + $0x2a8] sm:$0xff]
    %v573 = vld [vmem:[#allocation13 + $0x2b0] sm:$0xff]
    %v574 = vld [vmem:[#allocation13 + $0x2b8] sm:$0xff]
    %v575 = vld [vmem:[#allocation13 + $0x2c0] sm:$0xff]
    %v576 = vld [vmem:[#allocation13 + $0x2c8] sm:$0xff]
    %v577 = vld [vmem:[#allocation13 + $0x2d0] sm:$0xff]
    %v578 = vld [vmem:[#allocation13 + $0x2d8] sm:$0xff]
    %v579 = vld [vmem:[#allocation13 + $0x2e0] sm:$0xff]
    %v580 = vld [vmem:[#allocation13 + $0x2e8] sm:$0xff]
    %v581 = vld [vmem:[#allocation13 + $0x2f0] sm:$0xff]
    %v582 = vld [vmem:[#allocation13 + $0x2f8] sm:$0xff]
    %v583 = vld [vmem:[#allocation13 + $0x300] sm:$0xff]
    %v584 = vld [vmem:[#allocation13 + $0x308] sm:$0xff]
    %v585 = vld [vmem:[#allocation13 + $0x310] sm:$0xff]
    %v586 = vld [vmem:[#allocation13 + $0x318] sm:$0xff]
    %v587 = vld [vmem:[#allocation13 + $0x320] sm:$0xff]
    %v588 = vld [vmem:[#allocation13 + $0x328] sm:$0xff]
    %v589 = vld [vmem:[#allocation13 + $0x330] sm:$0xff]
    %v590 = vld [vmem:[#allocation13 + $0x338] sm:$0xff]
    %v591 = vld [vmem:[#allocation13 + $0x340] sm:$0xff]
    %v592 = vld [vmem:[#allocation13 + $0x348] sm:$0xff]
    %v593 = vld [vmem:[#allocation13 + $0x350] sm:$0xff]
    %v594 = vld [vmem:[#allocation13 + $0x358] sm:$0xff]
    %v595 = vld [vmem:[#allocation13 + $0x360] sm:$0xff]
    %v596 = vld [vmem:[#allocation13 + $0x368] sm:$0xff]
    %v597 = vld [vmem:[#allocation13 + $0x370] sm:$0xff]
    %v598 = vld [vmem:[#allocation13 + $0x378] sm:$0xff]
    %v599 = vld [vmem:[#allocation13 + $0x380] sm:$0xff]
    %v600 = vld [vmem:[#allocation13 + $0x388] sm:$0xff]
    %v601 = vld [vmem:[#allocation13 + $0x390] sm:$0xff]
    %v602 = vld [vmem:[#allocation13 + $0x398] sm:$0xff]
    %v603 = vld [vmem:[#allocation13 + $0x3a0] sm:$0xff]
    %v604 = vld [vmem:[#allocation13 + $0x3a8] sm:$0xff]
    %v605 = vld [vmem:[#allocation13 + $0x3b0] sm:$0xff]
    %v606 = vld [vmem:[#allocation13 + $0x3b8] sm:$0xff]
    %v607 = vld [vmem:[#allocation13 + $0x3c0] sm:$0xff]
    %v608 = vld [vmem:[#allocation13 + $0x3c8] sm:$0xff]
    %v609 = vld [vmem:[#allocation13 + $0x3d0] sm:$0xff]
    %v610 = vld [vmem:[#allocation13 + $0x3d8] sm:$0xff]
    %v611 = vld [vmem:[#allocation13 + $0x3e0] sm:$0xff]
    %v612 = vld [vmem:[#allocation13 + $0x3e8] sm:$0xff]
    %v613 = vld [vmem:[#allocation13 + $0x3f0] sm:$0xff]
    %v614 = vld [vmem:[#allocation13 + $0x3f8] sm:$0xff]
    %v615 = vld [vmem:[#allocation13 + $0x400] sm:$0xff]
    %v616 = vld [vmem:[#allocation13 + $0x408] sm:$0xff]
    %v617 = vld [vmem:[#allocation13 + $0x410] sm:$0xff]
    %v618 = vld [vmem:[#allocation13 + $0x418] sm:$0xff]
    %v619 = vld [vmem:[#allocation13 + $0x420] sm:$0xff]
    %v620 = vld [vmem:[#allocation13 + $0x428] sm:$0xff]
    %v621 = vld [vmem:[#allocation13 + $0x430] sm:$0xff]
    %v622 = vld [vmem:[#allocation13 + $0x438] sm:$0xff]
    %v623 = vld [vmem:[#allocation13 + $0x440] sm:$0xff]
    %v624 = vld [vmem:[#allocation13 + $0x448] sm:$0xff]
    %v625 = vld [vmem:[#allocation13 + $0x450] sm:$0xff]
    %v626 = vld [vmem:[#allocation13 + $0x458] sm:$0xff]
    %v627 = vld [vmem:[#allocation13 + $0x460] sm:$0xff]
    %v628 = vld [vmem:[#allocation13 + $0x468] sm:$0xff]
    %v629 = vld [vmem:[#allocation13 + $0x470] sm:$0xff]
    %v630 = vld [vmem:[#allocation13 + $0x478] sm:$0xff]
    %v631 = vld [vmem:[#allocation13 + $0x480] sm:$0xff]
    %v632 = vld [vmem:[#allocation13 + $0x488] sm:$0xff]
    %v633 = vld [vmem:[#allocation13 + $0x490] sm:$0xff]
    %v634 = vld [vmem:[#allocation13 + $0x498] sm:$0xff]
    %v635 = vld [vmem:[#allocation13 + $0x4a0] sm:$0xff]
    %v636 = vld [vmem:[#allocation13 + $0x4a8] sm:$0xff]
    %v637 = vld [vmem:[#allocation13 + $0x4b0] sm:$0xff]
    %v638 = vld [vmem:[#allocation13 + $0x4b8] sm:$0xff]
    %v639 = vld [vmem:[#allocation13 + $0x4c0] sm:$0xff]
    %v640 = vld [vmem:[#allocation13 + $0x4c8] sm:$0xff]
    %v641 = vld [vmem:[#allocation13 + $0x4d0] sm:$0xff]
    %v642 = vld [vmem:[#allocation13 + $0x4d8] sm:$0xff]
    %v643 = vld [vmem:[#allocation13 + $0x4e0] sm:$0xff]
    %v644 = vld [vmem:[#allocation13 + $0x4e8] sm:$0xff]
    %v645 = vld [vmem:[#allocation13 + $0x4f0] sm:$0xff]
    %v646 = vld [vmem:[#allocation13 + $0x4f8] sm:$0xff]
    %v647 = vld [vmem:[#allocation13 + $0x500] sm:$0xff]
    %v648 = vld [vmem:[#allocation13 + $0x508] sm:$0xff]
    %v649 = vld [vmem:[#allocation13 + $0x510] sm:$0xff]
    %v650 = vld [vmem:[#allocation13 + $0x518] sm:$0xff]
    %v651 = vld [vmem:[#allocation13 + $0x520] sm:$0xff]
    %v652 = vld [vmem:[#allocation13 + $0x528] sm:$0xff]
    %v653 = vld [vmem:[#allocation13 + $0x530] sm:$0xff]
    %v654 = vld [vmem:[#allocation13 + $0x538] sm:$0xff]
    %v655 = vld [vmem:[#allocation13 + $0x540] sm:$0xff]
    %v656 = vld [vmem:[#allocation13 + $0x548] sm:$0xff]
    %v657 = vld [vmem:[#allocation13 + $0x550] sm:$0xff]
    %v658 = vld [vmem:[#allocation13 + $0x558] sm:$0xff]
    %v659 = vld [vmem:[#allocation13 + $0x560] sm:$0xff]
    %v660 = vld [vmem:[#allocation13 + $0x568] sm:$0xff]
    %v661 = vld [vmem:[#allocation13 + $0x570] sm:$0xff]
    %v662 = vld [vmem:[#allocation13 + $0x578] sm:$0xff]
    %v663 = vld [vmem:[#allocation13 + $0x580] sm:$0xff]
    %v664 = vld [vmem:[#allocation13 + $0x588] sm:$0xff]
    %v665 = vld [vmem:[#allocation13 + $0x590] sm:$0xff]
    %v666 = vld [vmem:[#allocation13 + $0x598] sm:$0xff]
    %v667 = vld [vmem:[#allocation13 + $0x5a0] sm:$0xff]
    %v668 = vld [vmem:[#allocation13 + $0x5a8] sm:$0xff]
    %v669 = vld [vmem:[#allocation13 + $0x5b0] sm:$0xff]
    %v670 = vld [vmem:[#allocation13 + $0x5b8] sm:$0xff]
    %v671 = vld [vmem:[#allocation13 + $0x5c0] sm:$0xff]
    %v672 = vld [vmem:[#allocation13 + $0x5c8] sm:$0xff]
    %v673 = vld [vmem:[#allocation13 + $0x5d0] sm:$0xff]
    %v674 = vld [vmem:[#allocation13 + $0x5d8] sm:$0xff]
    %v675 = vld [vmem:[#allocation13 + $0x5e0] sm:$0xff]
    %v676 = vld [vmem:[#allocation13 + $0x5e8] sm:$0xff]
    %v677 = vld [vmem:[#allocation13 + $0x5f0] sm:$0xff]
    %v678 = vld [vmem:[#allocation13 + $0x5f8] sm:$0xff]
    %v679 = vld [vmem:[#allocation13 + $0x600] sm:$0xff]
    %v680 = vld [vmem:[#allocation13 + $0x608] sm:$0xff]
    %v681 = vld [vmem:[#allocation13 + $0x610] sm:$0xff]
    %v682 = vld [vmem:[#allocation13 + $0x618] sm:$0xff]
    %v683 = vld [vmem:[#allocation13 + $0x620] sm:$0xff]
    %v684 = vld [vmem:[#allocation13 + $0x628] sm:$0xff]
    %v685 = vld [vmem:[#allocation13 + $0x630] sm:$0xff]
    %v686 = vld [vmem:[#allocation13 + $0x638] sm:$0xff]
    %v687 = vld [vmem:[#allocation13 + $0x640] sm:$0xff]
    %v688 = vld [vmem:[#allocation13 + $0x648] sm:$0xff]
    %v689 = vld [vmem:[#allocation13 + $0x650] sm:$0xff]
    %v690 = vld [vmem:[#allocation13 + $0x658] sm:$0xff]
    %v691 = vld [vmem:[#allocation13 + $0x660] sm:$0xff]
    %v692 = vld [vmem:[#allocation13 + $0x668] sm:$0xff]
    %v693 = vld [vmem:[#allocation13 + $0x670] sm:$0xff]
    %v694 = vld [vmem:[#allocation13 + $0x678] sm:$0xff]
    %v695 = vld [vmem:[#allocation13 + $0x680] sm:$0xff]
    %v696 = vld [vmem:[#allocation13 + $0x688] sm:$0xff]
    %v697 = vld [vmem:[#allocation13 + $0x690] sm:$0xff]
    %v698 = vld [vmem:[#allocation13 + $0x698] sm:$0xff]
    %v699 = vld [vmem:[#allocation13 + $0x6a0] sm:$0xff]
    %v700 = vld [vmem:[#allocation13 + $0x6a8] sm:$0xff]
    %v701 = vld [vmem:[#allocation13 + $0x6b0] sm:$0xff]
    %v702 = vld [vmem:[#allocation13 + $0x6b8] sm:$0xff]
    %v703 = vld [vmem:[#allocation13 + $0x6c0] sm:$0xff]
    %v704 = vld [vmem:[#allocation13 + $0x6c8] sm:$0xff]
    %v705 = vld [vmem:[#allocation13 + $0x6d0] sm:$0xff]
    %v706 = vld [vmem:[#allocation13 + $0x6d8] sm:$0xff]
    %v707 = vld [vmem:[#allocation13 + $0x6e0] sm:$0xff]
    %v708 = vld [vmem:[#allocation13 + $0x6e8] sm:$0xff]
    %v709 = vld [vmem:[#allocation13 + $0x6f0] sm:$0xff]
    %v710 = vld [vmem:[#allocation13 + $0x6f8] sm:$0xff]
    %v711 = vld [vmem:[#allocation13 + $0x700] sm:$0xff]
    %v712 = vld [vmem:[#allocation13 + $0x708] sm:$0xff]
    %v713 = vld [vmem:[#allocation13 + $0x710] sm:$0xff]
    %v714 = vld [vmem:[#allocation13 + $0x718] sm:$0xff]
    %v715 = vld [vmem:[#allocation13 + $0x720] sm:$0xff]
    %v716 = vld [vmem:[#allocation13 + $0x728] sm:$0xff]
    %v717 = vld [vmem:[#allocation13 + $0x730] sm:$0xff]
    %v718 = vld [vmem:[#allocation13 + $0x738] sm:$0xff]
    %v719 = vld [vmem:[#allocation13 + $0x740] sm:$0xff]
    %v720 = vld [vmem:[#allocation13 + $0x748] sm:$0xff]
    %v721 = vld [vmem:[#allocation13 + $0x750] sm:$0xff]
    %v722 = vld [vmem:[#allocation13 + $0x758] sm:$0xff]
    %v723 = vld [vmem:[#allocation13 + $0x760] sm:$0xff]
    %v724 = vld [vmem:[#allocation13 + $0x768] sm:$0xff]
    %v725 = vld [vmem:[#allocation13 + $0x770] sm:$0xff]
    %v726 = vld [vmem:[#allocation13 + $0x778] sm:$0xff]
    %v727 = vld [vmem:[#allocation13 + $0x780] sm:$0xff]
    %v728 = vld [vmem:[#allocation13 + $0x788] sm:$0xff]
    %v729 = vld [vmem:[#allocation13 + $0x790] sm:$0xff]
    %v730 = vld [vmem:[#allocation13 + $0x798] sm:$0xff]
    %v731 = vld [vmem:[#allocation13 + $0x7a0] sm:$0xff]
    %v732 = vld [vmem:[#allocation13 + $0x7a8] sm:$0xff]
    %v733 = vld [vmem:[#allocation13 + $0x7b0] sm:$0xff]
    %v734 = vld [vmem:[#allocation13 + $0x7b8] sm:$0xff]
    %v735 = vld [vmem:[#allocation13 + $0x7c0] sm:$0xff]
    %v736 = vld [vmem:[#allocation13 + $0x7c8] sm:$0xff]
    %v737 = vld [vmem:[#allocation13 + $0x7d0] sm:$0xff]
    %v738 = vld [vmem:[#allocation13 + $0x7d8] sm:$0xff]
    %v739 = vld [vmem:[#allocation13 + $0x7e0] sm:$0xff]
    %v740 = vld [vmem:[#allocation13 + $0x7e8] sm:$0xff]
    %v741 = vld [vmem:[#allocation13 + $0x7f0] sm:$0xff]
    %v742 = vld [vmem:[#allocation13 + $0x7f8] sm:$0xff]
    %v743 = vld [vmem:[#allocation13 + $0x800] sm:$0xff]
    %v744 = vld [vmem:[#allocation13 + $0x808] sm:$0xff]
    %v745 = vld [vmem:[#allocation13 + $0x810] sm:$0xff]
    %v746 = vld [vmem:[#allocation13 + $0x818] sm:$0xff]
    %v747 = vld [vmem:[#allocation13 + $0x820] sm:$0xff]
    %v748 = vld [vmem:[#allocation13 + $0x828] sm:$0xff]
    %v749 = vld [vmem:[#allocation13 + $0x830] sm:$0xff]
    %v750 = vld [vmem:[#allocation13 + $0x838] sm:$0xff]
    %v751 = vld [vmem:[#allocation13 + $0x840] sm:$0xff]
    %v752 = vld [vmem:[#allocation13 + $0x848] sm:$0xff]
    %v753 = vld [vmem:[#allocation13 + $0x850] sm:$0xff]
    %v754 = vld [vmem:[#allocation13 + $0x858] sm:$0xff]
    %v755 = vld [vmem:[#allocation13 + $0x860] sm:$0xff]
    %v756 = vld [vmem:[#allocation13 + $0x868] sm:$0xff]
    %v757 = vld [vmem:[#allocation13 + $0x870] sm:$0xff]
    %v758 = vld [vmem:[#allocation13 + $0x878] sm:$0xff]
    %v759 = vld [vmem:[#allocation13 + $0x880] sm:$0xff]
    %v760 = vld [vmem:[#allocation13 + $0x888] sm:$0xff]
    %v761 = vld [vmem:[#allocation13 + $0x890] sm:$0xff]
    %v762 = vld [vmem:[#allocation13 + $0x898] sm:$0xff]
    %v763 = vld [vmem:[#allocation13 + $0x8a0] sm:$0xff]
    %v764 = vld [vmem:[#allocation13 + $0x8a8] sm:$0xff]
    %v765 = vld [vmem:[#allocation13 + $0x8b0] sm:$0xff]
    %v766 = vld [vmem:[#allocation13 + $0x8b8] sm:$0xff]
    %v767 = vld [vmem:[#allocation13 + $0x8c0] sm:$0xff]
    %v768 = vld [vmem:[#allocation13 + $0x8c8] sm:$0xff]
    %v769 = vld [vmem:[#allocation13 + $0x8d0] sm:$0xff]
    %v770 = vld [vmem:[#allocation13 + $0x8d8] sm:$0xff]
    %v771 = vld [vmem:[#allocation13 + $0x8e0] sm:$0xff]
    %v772 = vld [vmem:[#allocation13 + $0x8e8] sm:$0xff]
    %v773 = vld [vmem:[#allocation13 + $0x8f0] sm:$0xff]
    %v774 = vld [vmem:[#allocation13 + $0x8f8] sm:$0xff]
    %v775 = vld [vmem:[#allocation13 + $0x900] sm:$0xff]
    %v776 = vld [vmem:[#allocation13 + $0x908] sm:$0xff]
    %v777 = vld [vmem:[#allocation13 + $0x910] sm:$0xff]
    %v778 = vld [vmem:[#allocation13 + $0x918] sm:$0xff]
    %v779 = vld [vmem:[#allocation13 + $0x920] sm:$0xff]
    %v780 = vld [vmem:[#allocation13 + $0x928] sm:$0xff]
    %v781 = vld [vmem:[#allocation13 + $0x930] sm:$0xff]
    %v782 = vld [vmem:[#allocation13 + $0x938] sm:$0xff]
    %v783 = vld [vmem:[#allocation13 + $0x940] sm:$0xff]
    %v784 = vld [vmem:[#allocation13 + $0x948] sm:$0xff]
    %v785 = vld [vmem:[#allocation13 + $0x950] sm:$0xff]
    %v786 = vld [vmem:[#allocation13 + $0x958] sm:$0xff]
    %v787 = vld [vmem:[#allocation13 + $0x960] sm:$0xff]
    %v788 = vld [vmem:[#allocation13 + $0x968] sm:$0xff]
    %v789 = vld [vmem:[#allocation13 + $0x970] sm:$0xff]
    %v790 = vld [vmem:[#allocation13 + $0x978] sm:$0xff]
    %v791 = vld [vmem:[#allocation13 + $0x980] sm:$0xff]
    %v792 = vld [vmem:[#allocation13 + $0x988] sm:$0xff]
    %v793 = vld [vmem:[#allocation13 + $0x990] sm:$0xff]
    %v794 = vld [vmem:[#allocation13 + $0x998] sm:$0xff]
    %v795 = vld [vmem:[#allocation13 + $0x9a0] sm:$0xff]
    %v796 = vld [vmem:[#allocation13 + $0x9a8] sm:$0xff]
    %v797 = vld [vmem:[#allocation13 + $0x9b0] sm:$0xff]
    %v798 = vld [vmem:[#allocation13 + $0x9b8] sm:$0xff]
    %v799 = vld [vmem:[#allocation13 + $0x9c0] sm:$0xff]
    %v800 = vld [vmem:[#allocation13 + $0x9c8] sm:$0xff]
    %v801 = vld [vmem:[#allocation13 + $0x9d0] sm:$0xff]
    %v802 = vld [vmem:[#allocation13 + $0x9d8] sm:$0xff]
    %v803 = vld [vmem:[#allocation13 + $0x9e0] sm:$0xff]
    %v804 = vld [vmem:[#allocation13 + $0x9e8] sm:$0xff]
    %v805 = vld [vmem:[#allocation13 + $0x9f0] sm:$0xff]
    %v806 = vld [vmem:[#allocation13 + $0x9f8] sm:$0xff]
    %v807 = vld [vmem:[#allocation13 + $0xa00] sm:$0xff]
    %v808 = vld [vmem:[#allocation13 + $0xa08] sm:$0xff]
    %v809 = vld [vmem:[#allocation13 + $0xa10] sm:$0xff]
    %v810 = vld [vmem:[#allocation13 + $0xa18] sm:$0xff]
    %v811 = vld [vmem:[#allocation13 + $0xa20] sm:$0xff]
    %v812 = vld [vmem:[#allocation13 + $0xa28] sm:$0xff]
    %v813 = vld [vmem:[#allocation13 + $0xa30] sm:$0xff]
    %v814 = vld [vmem:[#allocation13 + $0xa38] sm:$0xff]
    %v815 = vld [vmem:[#allocation13 + $0xa40] sm:$0xff]
    %v816 = vld [vmem:[#allocation13 + $0xa48] sm:$0xff]
    %v817 = vld [vmem:[#allocation13 + $0xa50] sm:$0xff]
    %v818 = vld [vmem:[#allocation13 + $0xa58] sm:$0xff]
    %v819 = vld [vmem:[#allocation13 + $0xa60] sm:$0xff]
    %v820 = vld [vmem:[#allocation13 + $0xa68] sm:$0xff]
    %v821 = vld [vmem:[#allocation13 + $0xa70] sm:$0xff]
    %v822 = vld [vmem:[#allocation13 + $0xa78] sm:$0xff]
    %v823 = vld [vmem:[#allocation13 + $0xa80] sm:$0xff]
    %v824 = vld [vmem:[#allocation13 + $0xa88] sm:$0xff]
    %v825 = vld [vmem:[#allocation13 + $0xa90] sm:$0xff]
    %v826 = vld [vmem:[#allocation13 + $0xa98] sm:$0xff]
    %v827 = vld [vmem:[#allocation13 + $0xaa0] sm:$0xff]
    %v828 = vld [vmem:[#allocation13 + $0xaa8] sm:$0xff]
    %v829 = vld [vmem:[#allocation13 + $0xab0] sm:$0xff]
    %v830 = vld [vmem:[#allocation13 + $0xab8] sm:$0xff]
    %v831 = vld [vmem:[#allocation13 + $0xac0] sm:$0xff]
    %v832 = vld [vmem:[#allocation13 + $0xac8] sm:$0xff]
    %v833 = vld [vmem:[#allocation13 + $0xad0] sm:$0xff]
    %v834 = vld [vmem:[#allocation13 + $0xad8] sm:$0xff]
    %v835 = vld [vmem:[#allocation13 + $0xae0] sm:$0xff]
    %v836 = vld [vmem:[#allocation13 + $0xae8] sm:$0xff]
    %v837 = vld [vmem:[#allocation13 + $0xaf0] sm:$0xff]
    %v838 = vld [vmem:[#allocation13 + $0xaf8] sm:$0xff]
    %v839 = vld [vmem:[#allocation13 + $0xb00] sm:$0xff]
    %v840 = vld [vmem:[#allocation13 + $0xb08] sm:$0xff]
    %v841 = vld [vmem:[#allocation13 + $0xb10] sm:$0xff]
    %v842 = vld [vmem:[#allocation13 + $0xb18] sm:$0xff]
    %v843 = vld [vmem:[#allocation13 + $0xb20] sm:$0xff]
    %v844 = vld [vmem:[#allocation13 + $0xb28] sm:$0xff]
    %v845 = vld [vmem:[#allocation13 + $0xb30] sm:$0xff]
    %v846 = vld [vmem:[#allocation13 + $0xb38] sm:$0xff]
    %v847 = vld [vmem:[#allocation13 + $0xb40] sm:$0xff]
    %v848 = vld [vmem:[#allocation13 + $0xb48] sm:$0xff]
    %v849 = vld [vmem:[#allocation13 + $0xb50] sm:$0xff]
    %v850 = vld [vmem:[#allocation13 + $0xb58] sm:$0xff]
    %v851 = vld [vmem:[#allocation13 + $0xb60] sm:$0xff]
    %v852 = vld [vmem:[#allocation13 + $0xb68] sm:$0xff]
    %v853 = vld [vmem:[#allocation13 + $0xb70] sm:$0xff]
    %v854 = vld [vmem:[#allocation13 + $0xb78] sm:$0xff]
    %v855 = vld [vmem:[#allocation13 + $0xb80] sm:$0xff]
    %v856 = vld [vmem:[#allocation13 + $0xb88] sm:$0xff]
    %v857 = vld [vmem:[#allocation13 + $0xb90] sm:$0xff]
    %v858 = vld [vmem:[#allocation13 + $0xb98] sm:$0xff]
    %v859 = vld [vmem:[#allocation13 + $0xba0] sm:$0xff]
    %v860 = vld [vmem:[#allocation13 + $0xba8] sm:$0xff]
    %v861 = vld [vmem:[#allocation13 + $0xbb0] sm:$0xff]
    %v862 = vld [vmem:[#allocation13 + $0xbb8] sm:$0xff]
    %v863 = vld [vmem:[#allocation13 + $0xbc0] sm:$0xff]
    %v864 = vld [vmem:[#allocation13 + $0xbc8] sm:$0xff]
    %v865 = vld [vmem:[#allocation13 + $0xbd0] sm:$0xff]
    %v866 = vld [vmem:[#allocation13 + $0xbd8] sm:$0xff]
    %v867 = vld [vmem:[#allocation13 + $0xbe0] sm:$0xff]
    %v868 = vld [vmem:[#allocation13 + $0xbe8] sm:$0xff]
    %v869 = vld [vmem:[#allocation13 + $0xbf0] sm:$0xff]
    %v870 = vld [vmem:[#allocation13 + $0xbf8] sm:$0xff]
    %v871 = vld [vmem:[#allocation15] sm:$0x3f]
    %v873 = vperm.slane %v871, 0
    %v874 = vperm.slane %v871, 1
    %v875 = vperm.slane %v871, 2
    %v876 = vperm.slane %v871, 3
    %v877 = vperm.slane %v871, 4
    %v878 = vperm.slane %v871, 5
    %885 = vmatpush.msra.mxu0 %v577
    %886 = vmatpush.msra.mxu0 %v571
    %887 = vmatpush.msra.mxu0 %v565
    %888 = vmatpush.msra.mxu0 %v559
    %889 = vmatpush.msra.mxu0 %v553
    %890 = vmatpush.msra.mxu0 %v547
    %891 = vmatpush.msra.mxu0 %v541
    %892 = vmatpush.msra.mxu0 %v535
    %893 = vmatpush.msra.mxu0 %v529
    %894 = vmatpush.msra.mxu0 %v523
    %895 = vmatpush.msra.mxu0 %v517
    %896 = vmatpush.msra.mxu0 %v511
    %897 = vmatpush.msra.mxu0 %v505
    %898 = vmatpush.msra.mxu0 %v499
    %899 = vmatpush.msra.mxu0 %v493
    %900 = vmatpush.msra.mxu0 %v487
    %901 = vmatmul.f32.gmra.mxu0 %v483
    %v902 = vpop.f32.mrf.mxu0
    %v903 = vadd.f32 %v873, %v902
    %904 = vdwg.mxu0
    %905 = vmatpush.msra.mxu0 %v673
    %906 = vmatpush.msra.mxu0 %v667
    %907 = vmatpush.msra.mxu0 %v661
    %908 = vmatpush.msra.mxu0 %v655
    %909 = vmatpush.msra.mxu0 %v649
    %910 = vmatpush.msra.mxu0 %v643
    %911 = vmatpush.msra.mxu0 %v637
    %912 = vmatpush.msra.mxu0 %v631
    %913 = vmatpush.msra.mxu0 %v625
    %914 = vmatpush.msra.mxu0 %v619
    %915 = vmatpush.msra.mxu0 %v613
    %916 = vmatpush.msra.mxu0 %v607
    %917 = vmatpush.msra.mxu0 %v601
    %918 = vmatpush.msra.mxu0 %v595
    %919 = vmatpush.msra.mxu0 %v589
    %920 = vmatpush.msra.mxu0 %v583
    %921 = vmatmul.f32.gmra.mxu0 %v484
    %v922 = vpop.f32.mrf.mxu0
    %v923 = vadd.f32 %v903, %v922
    %924 = vdwg.mxu0
    %925 = vmatpush.msra.mxu0 %v769
    %926 = vmatpush.msra.mxu0 %v763
    %927 = vmatpush.msra.mxu0 %v757
    %928 = vmatpush.msra.mxu0 %v751
    %929 = vmatpush.msra.mxu0 %v745
    %930 = vmatpush.msra.mxu0 %v739
    %931 = vmatpush.msra.mxu0 %v733
    %932 = vmatpush.msra.mxu0 %v727
    %933 = vmatpush.msra.mxu0 %v721
    %934 = vmatpush.msra.mxu0 %v715
    %935 = vmatpush.msra.mxu0 %v709
    %936 = vmatpush.msra.mxu0 %v703
    %937 = vmatpush.msra.mxu0 %v697
    %938 = vmatpush.msra.mxu0 %v691
    %939 = vmatpush.msra.mxu0 %v685
    %940 = vmatpush.msra.mxu0 %v679
    %941 = vmatmul.f32.gmra.mxu0 %v485
    %v942 = vpop.f32.mrf.mxu0
    %v943 = vadd.f32 %v923, %v942
    %944 = vdwg.mxu0
    %945 = vmatpush.msra.mxu0 %v865
    %946 = vmatpush.msra.mxu0 %v859
    %947 = vmatpush.msra.mxu0 %v853
    %948 = vmatpush.msra.mxu0 %v847
    %949 = vmatpush.msra.mxu0 %v841
    %950 = vmatpush.msra.mxu0 %v835
    %951 = vmatpush.msra.mxu0 %v829
    %952 = vmatpush.msra.mxu0 %v823
    %953 = vmatpush.msra.mxu0 %v817
    %954 = vmatpush.msra.mxu0 %v811
    %955 = vmatpush.msra.mxu0 %v805
    %956 = vmatpush.msra.mxu0 %v799
    %957 = vmatpush.msra.mxu0 %v793
    %958 = vmatpush.msra.mxu0 %v787
    %959 = vmatpush.msra.mxu0 %v781
    %960 = vmatpush.msra.mxu0 %v775
    %961 = vmatmul.f32.gmra.mxu0 %v486
    %v962 = vpop.f32.mrf.mxu0
    %v963 = vadd.f32 %v943, %v962
    %964 = vdwg.mxu0
    %965 = vmatpush.msra.mxu0 %v578
    %966 = vmatpush.msra.mxu0 %v572
    %967 = vmatpush.msra.mxu0 %v566
    %968 = vmatpush.msra.mxu0 %v560
    %969 = vmatpush.msra.mxu0 %v554
    %970 = vmatpush.msra.mxu0 %v548
    %971 = vmatpush.msra.mxu0 %v542
    %972 = vmatpush.msra.mxu0 %v536
    %973 = vmatpush.msra.mxu0 %v530
    %974 = vmatpush.msra.mxu0 %v524
    %975 = vmatpush.msra.mxu0 %v518
    %976 = vmatpush.msra.mxu0 %v512
    %977 = vmatpush.msra.mxu0 %v506
    %978 = vmatpush.msra.mxu0 %v500
    %979 = vmatpush.msra.mxu0 %v494
    %980 = vmatpush.msra.mxu0 %v488
    %981 = vmatmul.f32.gmra.mxu0 %v483
    %v982 = vpop.f32.mrf.mxu0
    %v983 = vadd.f32 %v874, %v982
    %984 = vdwg.mxu0
    %985 = vmatpush.msra.mxu0 %v674
    %986 = vmatpush.msra.mxu0 %v668
    %987 = vmatpush.msra.mxu0 %v662
    %988 = vmatpush.msra.mxu0 %v656
    %989 = vmatpush.msra.mxu0 %v650
    %990 = vmatpush.msra.mxu0 %v644
    %991 = vmatpush.msra.mxu0 %v638
    %992 = vmatpush.msra.mxu0 %v632
    %993 = vmatpush.msra.mxu0 %v626
    %994 = vmatpush.msra.mxu0 %v620
    %995 = vmatpush.msra.mxu0 %v614
    %996 = vmatpush.msra.mxu0 %v608
    %997 = vmatpush.msra.mxu0 %v602
    %998 = vmatpush.msra.mxu0 %v596
    %999 = vmatpush.msra.mxu0 %v590
    %1000 = vmatpush.msra.mxu0 %v584
    %1001 = vmatmul.f32.gmra.mxu0 %v484
    %v1002 = vpop.f32.mrf.mxu0
    %v1003 = vadd.f32 %v983, %v1002
    %1004 = vdwg.mxu0
    %1005 = vmatpush.msra.mxu0 %v770
    %1006 = vmatpush.msra.mxu0 %v764
    %1007 = vmatpush.msra.mxu0 %v758
    %1008 = vmatpush.msra.mxu0 %v752
    %1009 = vmatpush.msra.mxu0 %v746
    %1010 = vmatpush.msra.mxu0 %v740
    %1011 = vmatpush.msra.mxu0 %v734
    %1012 = vmatpush.msra.mxu0 %v728
    %1013 = vmatpush.msra.mxu0 %v722
    %1014 = vmatpush.msra.mxu0 %v716
    %1015 = vmatpush.msra.mxu0 %v710
    %1016 = vmatpush.msra.mxu0 %v704
    %1017 = vmatpush.msra.mxu0 %v698
    %1018 = vmatpush.msra.mxu0 %v692
    %1019 = vmatpush.msra.mxu0 %v686
    %1020 = vmatpush.msra.mxu0 %v680
    %1021 = vmatmul.f32.gmra.mxu0 %v485
    %v1022 = vpop.f32.mrf.mxu0
    %v1023 = vadd.f32 %v1003, %v1022
    %1024 = vdwg.mxu0
    %1025 = vmatpush.msra.mxu0 %v866
    %1026 = vmatpush.msra.mxu0 %v860
    %1027 = vmatpush.msra.mxu0 %v854
    %1028 = vmatpush.msra.mxu0 %v848
    %1029 = vmatpush.msra.mxu0 %v842
    %1030 = vmatpush.msra.mxu0 %v836
    %1031 = vmatpush.msra.mxu0 %v830
    %1032 = vmatpush.msra.mxu0 %v824
    %1033 = vmatpush.msra.mxu0 %v818
    %1034 = vmatpush.msra.mxu0 %v812
    %1035 = vmatpush.msra.mxu0 %v806
    %1036 = vmatpush.msra.mxu0 %v800
    %1037 = vmatpush.msra.mxu0 %v794
    %1038 = vmatpush.msra.mxu0 %v788
    %1039 = vmatpush.msra.mxu0 %v782
    %1040 = vmatpush.msra.mxu0 %v776
    %1041 = vmatmul.f32.gmra.mxu0 %v486
    %v1042 = vpop.f32.mrf.mxu0
    %v1043 = vadd.f32 %v1023, %v1042
    %1044 = vdwg.mxu0
    %1045 = vmatpush.msra.mxu0 %v579
    %1046 = vmatpush.msra.mxu0 %v573
    %1047 = vmatpush.msra.mxu0 %v567
    %1048 = vmatpush.msra.mxu0 %v561
    %1049 = vmatpush.msra.mxu0 %v555
    %1050 = vmatpush.msra.mxu0 %v549
    %1051 = vmatpush.msra.mxu0 %v543
    %1052 = vmatpush.msra.mxu0 %v537
    %1053 = vmatpush.msra.mxu0 %v531
    %1054 = vmatpush.msra.mxu0 %v525
    %1055 = vmatpush.msra.mxu0 %v519
    %1056 = vmatpush.msra.mxu0 %v513
    %1057 = vmatpush.msra.mxu0 %v507
    %1058 = vmatpush.msra.mxu0 %v501
    %1059 = vmatpush.msra.mxu0 %v495
    %1060 = vmatpush.msra.mxu0 %v489
    %1061 = vmatmul.f32.gmra.mxu0 %v483
    %v1062 = vpop.f32.mrf.mxu0
    %v1063 = vadd.f32 %v875, %v1062
    %1064 = vdwg.mxu0
    %1065 = vmatpush.msra.mxu0 %v675
    %1066 = vmatpush.msra.mxu0 %v669
    %1067 = vmatpush.msra.mxu0 %v663
    %1068 = vmatpush.msra.mxu0 %v657
    %1069 = vmatpush.msra.mxu0 %v651
    %1070 = vmatpush.msra.mxu0 %v645
    %1071 = vmatpush.msra.mxu0 %v639
    %1072 = vmatpush.msra.mxu0 %v633
    %1073 = vmatpush.msra.mxu0 %v627
    %1074 = vmatpush.msra.mxu0 %v621
    %1075 = vmatpush.msra.mxu0 %v615
    %1076 = vmatpush.msra.mxu0 %v609
    %1077 = vmatpush.msra.mxu0 %v603
    %1078 = vmatpush.msra.mxu0 %v597
    %1079 = vmatpush.msra.mxu0 %v591
    %1080 = vmatpush.msra.mxu0 %v585
    %1081 = vmatmul.f32.gmra.mxu0 %v484
    %v1082 = vpop.f32.mrf.mxu0
    %v1083 = vadd.f32 %v1063, %v1082
    %1084 = vdwg.mxu0
    %1085 = vmatpush.msra.mxu0 %v771
    %1086 = vmatpush.msra.mxu0 %v765
    %1087 = vmatpush.msra.mxu0 %v759
    %1088 = vmatpush.msra.mxu0 %v753
    %1089 = vmatpush.msra.mxu0 %v747
    %1090 = vmatpush.msra.mxu0 %v741
    %1091 = vmatpush.msra.mxu0 %v735
    %1092 = vmatpush.msra.mxu0 %v729
    %1093 = vmatpush.msra.mxu0 %v723
    %1094 = vmatpush.msra.mxu0 %v717
    %1095 = vmatpush.msra.mxu0 %v711
    %1096 = vmatpush.msra.mxu0 %v705
    %1097 = vmatpush.msra.mxu0 %v699
    %1098 = vmatpush.msra.mxu0 %v693
    %1099 = vmatpush.msra.mxu0 %v687
    %1100 = vmatpush.msra.mxu0 %v681
    %1101 = vmatmul.f32.gmra.mxu0 %v485
    %v1102 = vpop.f32.mrf.mxu0
    %v1103 = vadd.f32 %v1083, %v1102
    %1104 = vdwg.mxu0
    %1105 = vmatpush.msra.mxu0 %v867
    %1106 = vmatpush.msra.mxu0 %v861
    %1107 = vmatpush.msra.mxu0 %v855
    %1108 = vmatpush.msra.mxu0 %v849
    %1109 = vmatpush.msra.mxu0 %v843
    %1110 = vmatpush.msra.mxu0 %v837
    %1111 = vmatpush.msra.mxu0 %v831
    %1112 = vmatpush.msra.mxu0 %v825
    %1113 = vmatpush.msra.mxu0 %v819
    %1114 = vmatpush.msra.mxu0 %v813
    %1115 = vmatpush.msra.mxu0 %v807
    %1116 = vmatpush.msra.mxu0 %v801
    %1117 = vmatpush.msra.mxu0 %v795
    %1118 = vmatpush.msra.mxu0 %v789
    %1119 = vmatpush.msra.mxu0 %v783
    %1120 = vmatpush.msra.mxu0 %v777
    %1121 = vmatmul.f32.gmra.mxu0 %v486
    %v1122 = vpop.f32.mrf.mxu0
    %v1123 = vadd.f32 %v1103, %v1122
    %1124 = vdwg.mxu0
    %1125 = vmatpush.msra.mxu0 %v580
    %1126 = vmatpush.msra.mxu0 %v574
    %1127 = vmatpush.msra.mxu0 %v568
    %1128 = vmatpush.msra.mxu0 %v562
    %1129 = vmatpush.msra.mxu0 %v556
    %1130 = vmatpush.msra.mxu0 %v550
    %1131 = vmatpush.msra.mxu0 %v544
    %1132 = vmatpush.msra.mxu0 %v538
    %1133 = vmatpush.msra.mxu0 %v532
    %1134 = vmatpush.msra.mxu0 %v526
    %1135 = vmatpush.msra.mxu0 %v520
    %1136 = vmatpush.msra.mxu0 %v514
    %1137 = vmatpush.msra.mxu0 %v508
    %1138 = vmatpush.msra.mxu0 %v502
    %1139 = vmatpush.msra.mxu0 %v496
    %1140 = vmatpush.msra.mxu0 %v490
    %1141 = vmatmul.f32.gmra.mxu0 %v483
    %v1142 = vpop.f32.mrf.mxu0
    %v1143 = vadd.f32 %v876, %v1142
    %1144 = vdwg.mxu0
    %1145 = vmatpush.msra.mxu0 %v676
    %1146 = vmatpush.msra.mxu0 %v670
    %1147 = vmatpush.msra.mxu0 %v664
    %1148 = vmatpush.msra.mxu0 %v658
    %1149 = vmatpush.msra.mxu0 %v652
    %1150 = vmatpush.msra.mxu0 %v646
    %1151 = vmatpush.msra.mxu0 %v640
    %1152 = vmatpush.msra.mxu0 %v634
    %1153 = vmatpush.msra.mxu0 %v628
    %1154 = vmatpush.msra.mxu0 %v622
    %1155 = vmatpush.msra.mxu0 %v616
    %1156 = vmatpush.msra.mxu0 %v610
    %1157 = vmatpush.msra.mxu0 %v604
    %1158 = vmatpush.msra.mxu0 %v598
    %1159 = vmatpush.msra.mxu0 %v592
    %1160 = vmatpush.msra.mxu0 %v586
    %1161 = vmatmul.f32.gmra.mxu0 %v484
    %v1162 = vpop.f32.mrf.mxu0
    %v1163 = vadd.f32 %v1143, %v1162
    %1164 = vdwg.mxu0
    %1165 = vmatpush.msra.mxu0 %v772
    %1166 = vmatpush.msra.mxu0 %v766
    %1167 = vmatpush.msra.mxu0 %v760
    %1168 = vmatpush.msra.mxu0 %v754
    %1169 = vmatpush.msra.mxu0 %v748
    %1170 = vmatpush.msra.mxu0 %v742
    %1171 = vmatpush.msra.mxu0 %v736
    %1172 = vmatpush.msra.mxu0 %v730
    %1173 = vmatpush.msra.mxu0 %v724
    %1174 = vmatpush.msra.mxu0 %v718
    %1175 = vmatpush.msra.mxu0 %v712
    %1176 = vmatpush.msra.mxu0 %v706
    %1177 = vmatpush.msra.mxu0 %v700
    %1178 = vmatpush.msra.mxu0 %v694
    %1179 = vmatpush.msra.mxu0 %v688
    %1180 = vmatpush.msra.mxu0 %v682
    %1181 = vmatmul.f32.gmra.mxu0 %v485
    %v1182 = vpop.f32.mrf.mxu0
    %v1183 = vadd.f32 %v1163, %v1182
    %1184 = vdwg.mxu0
    %1185 = vmatpush.msra.mxu0 %v868
    %1186 = vmatpush.msra.mxu0 %v862
    %1187 = vmatpush.msra.mxu0 %v856
    %1188 = vmatpush.msra.mxu0 %v850
    %1189 = vmatpush.msra.mxu0 %v844
    %1190 = vmatpush.msra.mxu0 %v838
    %1191 = vmatpush.msra.mxu0 %v832
    %1192 = vmatpush.msra.mxu0 %v826
    %1193 = vmatpush.msra.mxu0 %v820
    %1194 = vmatpush.msra.mxu0 %v814
    %1195 = vmatpush.msra.mxu0 %v808
    %1196 = vmatpush.msra.mxu0 %v802
    %1197 = vmatpush.msra.mxu0 %v796
    %1198 = vmatpush.msra.mxu0 %v790
    %1199 = vmatpush.msra.mxu0 %v784
    %1200 = vmatpush.msra.mxu0 %v778
    %1201 = vmatmul.f32.gmra.mxu0 %v486
    %v1202 = vpop.f32.mrf.mxu0
    %v1203 = vadd.f32 %v1183, %v1202
    %1204 = vdwg.mxu0
    %1205 = vmatpush.msra.mxu0 %v581
    %1206 = vmatpush.msra.mxu0 %v575
    %1207 = vmatpush.msra.mxu0 %v569
    %1208 = vmatpush.msra.mxu0 %v563
    %1209 = vmatpush.msra.mxu0 %v557
    %1210 = vmatpush.msra.mxu0 %v551
    %1211 = vmatpush.msra.mxu0 %v545
    %1212 = vmatpush.msra.mxu0 %v539
    %1213 = vmatpush.msra.mxu0 %v533
    %1214 = vmatpush.msra.mxu0 %v527
    %1215 = vmatpush.msra.mxu0 %v521
    %1216 = vmatpush.msra.mxu0 %v515
    %1217 = vmatpush.msra.mxu0 %v509
    %1218 = vmatpush.msra.mxu0 %v503
    %1219 = vmatpush.msra.mxu0 %v497
    %1220 = vmatpush.msra.mxu0 %v491
    %1221 = vmatmul.f32.gmra.mxu0 %v483
    %v1222 = vpop.f32.mrf.mxu0
    %v1223 = vadd.f32 %v877, %v1222
    %1224 = vdwg.mxu0
    %1225 = vmatpush.msra.mxu0 %v677
    %1226 = vmatpush.msra.mxu0 %v671
    %1227 = vmatpush.msra.mxu0 %v665
    %1228 = vmatpush.msra.mxu0 %v659
    %1229 = vmatpush.msra.mxu0 %v653
    %1230 = vmatpush.msra.mxu0 %v647
    %1231 = vmatpush.msra.mxu0 %v641
    %1232 = vmatpush.msra.mxu0 %v635
    %1233 = vmatpush.msra.mxu0 %v629
    %1234 = vmatpush.msra.mxu0 %v623
    %1235 = vmatpush.msra.mxu0 %v617
    %1236 = vmatpush.msra.mxu0 %v611
    %1237 = vmatpush.msra.mxu0 %v605
    %1238 = vmatpush.msra.mxu0 %v599
    %1239 = vmatpush.msra.mxu0 %v593
    %1240 = vmatpush.msra.mxu0 %v587
    %1241 = vmatmul.f32.gmra.mxu0 %v484
    %v1242 = vpop.f32.mrf.mxu0
    %v1243 = vadd.f32 %v1223, %v1242
    %1244 = vdwg.mxu0
    %1245 = vmatpush.msra.mxu0 %v773
    %1246 = vmatpush.msra.mxu0 %v767
    %1247 = vmatpush.msra.mxu0 %v761
    %1248 = vmatpush.msra.mxu0 %v755
    %1249 = vmatpush.msra.mxu0 %v749
    %1250 = vmatpush.msra.mxu0 %v743
    %1251 = vmatpush.msra.mxu0 %v737
    %1252 = vmatpush.msra.mxu0 %v731
    %1253 = vmatpush.msra.mxu0 %v725
    %1254 = vmatpush.msra.mxu0 %v719
    %1255 = vmatpush.msra.mxu0 %v713
    %1256 = vmatpush.msra.mxu0 %v707
    %1257 = vmatpush.msra.mxu0 %v701
    %1258 = vmatpush.msra.mxu0 %v695
    %1259 = vmatpush.msra.mxu0 %v689
    %1260 = vmatpush.msra.mxu0 %v683
    %1261 = vmatmul.f32.gmra.mxu0 %v485
    %v1262 = vpop.f32.mrf.mxu0
    %v1263 = vadd.f32 %v1243, %v1262
    %1264 = vdwg.mxu0
    %1265 = vmatpush.msra.mxu0 %v869
    %1266 = vmatpush.msra.mxu0 %v863
    %1267 = vmatpush.msra.mxu0 %v857
    %1268 = vmatpush.msra.mxu0 %v851
    %1269 = vmatpush.msra.mxu0 %v845
    %1270 = vmatpush.msra.mxu0 %v839
    %1271 = vmatpush.msra.mxu0 %v833
    %1272 = vmatpush.msra.mxu0 %v827
    %1273 = vmatpush.msra.mxu0 %v821
    %1274 = vmatpush.msra.mxu0 %v815
    %1275 = vmatpush.msra.mxu0 %v809
    %1276 = vmatpush.msra.mxu0 %v803
    %1277 = vmatpush.msra.mxu0 %v797
    %1278 = vmatpush.msra.mxu0 %v791
    %1279 = vmatpush.msra.mxu0 %v785
    %1280 = vmatpush.msra.mxu0 %v779
    %1281 = vmatmul.f32.gmra.mxu0 %v486
    %v1282 = vpop.f32.mrf.mxu0
    %v1283 = vadd.f32 %v1263, %v1282
    %1284 = vdwg.mxu0
    %1285 = vmatpush.msra.mxu0 %v582
    %1286 = vmatpush.msra.mxu0 %v576
    %1287 = vmatpush.msra.mxu0 %v570
    %1288 = vmatpush.msra.mxu0 %v564
    %1289 = vmatpush.msra.mxu0 %v558
    %1290 = vmatpush.msra.mxu0 %v552
    %1291 = vmatpush.msra.mxu0 %v546
    %1292 = vmatpush.msra.mxu0 %v540
    %1293 = vmatpush.msra.mxu0 %v534
    %1294 = vmatpush.msra.mxu0 %v528
    %1295 = vmatpush.msra.mxu0 %v522
    %1296 = vmatpush.msra.mxu0 %v516
    %1297 = vmatpush.msra.mxu0 %v510
    %1298 = vmatpush.msra.mxu0 %v504
    %1299 = vmatpush.msra.mxu0 %v498
    %1300 = vmatpush.msra.mxu0 %v492
    %1301 = vmatmul.f32.gmra.mxu0 %v483
    %v1302 = vpop.f32.mrf.mxu0
    %v1303 = vadd.f32 %v878, %v1302
    %1304 = vdwg.mxu0
    %1305 = vmatpush.msra.mxu0 %v678
    %1306 = vmatpush.msra.mxu0 %v672
    %1307 = vmatpush.msra.mxu0 %v666
    %1308 = vmatpush.msra.mxu0 %v660
    %1309 = vmatpush.msra.mxu0 %v654
    %1310 = vmatpush.msra.mxu0 %v648
    %1311 = vmatpush.msra.mxu0 %v642
    %1312 = vmatpush.msra.mxu0 %v636
    %1313 = vmatpush.msra.mxu0 %v630
    %1314 = vmatpush.msra.mxu0 %v624
    %1315 = vmatpush.msra.mxu0 %v618
    %1316 = vmatpush.msra.mxu0 %v612
    %1317 = vmatpush.msra.mxu0 %v606
    %1318 = vmatpush.msra.mxu0 %v600
    %1319 = vmatpush.msra.mxu0 %v594
    %1320 = vmatpush.msra.mxu0 %v588
    %1321 = vmatmul.f32.gmra.mxu0 %v484
    %v1322 = vpop.f32.mrf.mxu0
    %v1323 = vadd.f32 %v1303, %v1322
    %1324 = vdwg.mxu0
    %1325 = vmatpush.msra.mxu0 %v774
    %1326 = vmatpush.msra.mxu0 %v768
    %1327 = vmatpush.msra.mxu0 %v762
    %1328 = vmatpush.msra.mxu0 %v756
    %1329 = vmatpush.msra.mxu0 %v750
    %1330 = vmatpush.msra.mxu0 %v744
    %1331 = vmatpush.msra.mxu0 %v738
    %1332 = vmatpush.msra.mxu0 %v732
    %1333 = vmatpush.msra.mxu0 %v726
    %1334 = vmatpush.msra.mxu0 %v720
    %1335 = vmatpush.msra.mxu0 %v714
    %1336 = vmatpush.msra.mxu0 %v708
    %1337 = vmatpush.msra.mxu0 %v702
    %1338 = vmatpush.msra.mxu0 %v696
    %1339 = vmatpush.msra.mxu0 %v690
    %1340 = vmatpush.msra.mxu0 %v684
    %1341 = vmatmul.f32.gmra.mxu0 %v485
    %v1342 = vpop.f32.mrf.mxu0
    %v1343 = vadd.f32 %v1323, %v1342
    %1344 = vdwg.mxu0
    %1345 = vmatpush.msra.mxu0 %v870
    %1346 = vmatpush.msra.mxu0 %v864
    %1347 = vmatpush.msra.mxu0 %v858
    %1348 = vmatpush.msra.mxu0 %v852
    %1349 = vmatpush.msra.mxu0 %v846
    %1350 = vmatpush.msra.mxu0 %v840
    %1351 = vmatpush.msra.mxu0 %v834
    %1352 = vmatpush.msra.mxu0 %v828
    %1353 = vmatpush.msra.mxu0 %v822
    %1354 = vmatpush.msra.mxu0 %v816
    %1355 = vmatpush.msra.mxu0 %v810
    %1356 = vmatpush.msra.mxu0 %v804
    %1357 = vmatpush.msra.mxu0 %v798
    %1358 = vmatpush.msra.mxu0 %v792
    %1359 = vmatpush.msra.mxu0 %v786
    %1360 = vmatpush.msra.mxu0 %v780
    %1361 = vmatmul.f32.gmra.mxu0 %v486
    %v1362 = vpop.f32.mrf.mxu0
    %v1363 = vadd.f32 %v1343, %v1362
    %1364 = vdwg.mxu0
    %v1365 = vtanh.pop %v963
    %v1366 = vtanh.pop %v1043
    %v1367 = vtanh.pop %v1123
    %v1371 = vrot.slane %v1366, 4
    %v1372 = vsel %vm225, %v1365, %v1371
    %v1373 = vsel %vm225, %v1371, %v1365
    %v1374 = vrot.slane %v1373, 4
    %v1375 = vrot.slane %v1367, 4
    %v1382 = vrot.slane %v1283, 4
    %v1383 = vsel %vm225, %v1203, %v1382
    %v1384 = vsel %vm225, %v1382, %v1203
    %v1385 = vrot.slane %v1384, 4
    %v1386 = vrot.slane %v1363, 4
    %1390 = vst [vmem:[#allocation1] ss:$2 sm:$0xff] %v1372
    %s1391 = scalar_lea.vmem [#allocation1], 16
    %1392 = vst [vmem:[%s1391] ss:$2 sm:$0xff] %v1367
    %v1393 = vld.sshfl [vmem:[#allocation1] sm:$0xff pattern:$0x75316420]
    %v1394 = vld.sshfl [vmem:[#allocation1 + $0x8] sm:$0xff pattern:$0x75316420]
    %v1395 = vld.sshfl [vmem:[#allocation1 + $0x10] sm:$0xff pattern:$0x75316420]
    %s1396 = scalar_lea.vmem [#allocation1], 32
    %1397 = vst [vmem:[%s1396] ss:$2 sm:$0xff] %v1374
    %s1398 = scalar_lea.vmem [#allocation1], 48
    %1399 = vst [vmem:[%s1398] ss:$2 sm:$0xff] %v1375
    %v1400 = vld.sshfl [vmem:[#allocation1 + $0x20] sm:$0xff pattern:$0x75316420]
    %v1401 = vld.sshfl [vmem:[#allocation1 + $0x28] sm:$0xff pattern:$0x75316420]
    %v1402 = vld.sshfl [vmem:[#allocation1 + $0x30] sm:$0xff pattern:$0x75316420]
    %v1409 = vsel %vm225, %v1393, -inf
    %v1410 = vrot.slane %v1409, 4
    %v1411 = vmax.f32 %v1409, %v1410
    %v1412 = vrot.slane %v1411, 2
    %v1413 = vmax.f32 %v1411, %v1412
    %v1414 = vrot.slane %v1413, 1
    %v1415 = vmax.f32 %v1413, %v1414
    %v1416 = vsel %vm225, %v1394, -inf
    %v1417 = vrot.slane %v1416, 4
    %v1418 = vmax.f32 %v1416, %v1417
    %v1419 = vrot.slane %v1418, 2
    %v1420 = vmax.f32 %v1418, %v1419
    %v1421 = vrot.slane %v1420, 1
    %v1422 = vmax.f32 %v1420, %v1421
    %v1423 = vsel %vm225, %v1395, -inf
    %v1424 = vrot.slane %v1423, 4
    %v1425 = vmax.f32 %v1423, %v1424
    %v1426 = vrot.slane %v1425, 2
    %v1427 = vmax.f32 %v1425, %v1426
    %v1428 = vrot.slane %v1427, 1
    %v1429 = vmax.f32 %v1427, %v1428
    %v1430 = vsel %vm225, %v1400, -inf
    %v1431 = vrot.slane %v1430, 4
    %v1432 = vmax.f32 %v1430, %v1431
    %v1433 = vrot.slane %v1432, 2
    %v1434 = vmax.f32 %v1432, %v1433
    %v1435 = vrot.slane %v1434, 1
    %v1436 = vmax.f32 %v1434, %v1435
    %v1437 = vsel %vm225, %v1401, -inf
    %v1438 = vrot.slane %v1437, 4
    %v1439 = vmax.f32 %v1437, %v1438
    %v1440 = vrot.slane %v1439, 2
    %v1441 = vmax.f32 %v1439, %v1440
    %v1442 = vrot.slane %v1441, 1
    %v1443 = vmax.f32 %v1441, %v1442
    %v1444 = vsel %vm225, %v1402, -inf
    %v1445 = vrot.slane %v1444, 4
    %v1446 = vmax.f32 %v1444, %v1445
    %v1447 = vrot.slane %v1446, 2
    %v1448 = vmax.f32 %v1446, %v1447
    %v1449 = vrot.slane %v1448, 1
    %v1450 = vmax.f32 %v1448, %v1449
    %v1455 = vrot.slane %v1422, 4
    %v1456 = vrot.slane %v1443, 4
    %v1457 = vsel %vm225, %v1415, %v1455
    %v1458 = vsel %vm225, %v1436, %v1456
    %v1461 = vsub.f32 %v1372, %v1457
    %v1462 = vsub.f32 %v1367, %v1429
    %v1463 = vsub.f32 %v1374, %v1458
    %v1464 = vsub.f32 %v1375, %v1450
    %v1465 = vmul.f32 %v1461, 1.442695
    %v1466 = vpow.pop %v1465
    %v1467 = vmul.f32 %v1462, 1.442695
    %v1468 = vpow.pop %v1467
    %v1469 = vmul.f32 %v1463, 1.442695
    %v1470 = vpow.pop %v1469
    %v1471 = vmul.f32 %v1464, 1.442695
    %v1472 = vpow.pop %v1471
    %1477 = vst [vmem:[#allocation1] ss:$2 sm:$0xff] %v1466
    %s1478 = scalar_lea.vmem [#allocation1], 16
    %1479 = vst [vmem:[%s1478] ss:$2 sm:$0xff] %v1468
    %v1480 = vld.sshfl [vmem:[#allocation1] sm:$0xff pattern:$0x75316420]
    %v1481 = vld.sshfl [vmem:[#allocation1 + $0x8] sm:$0xff pattern:$0x75316420]
    %v1482 = vld.sshfl [vmem:[#allocation1 + $0x10] sm:$0xff pattern:$0x75316420]
    %s1483 = scalar_lea.vmem [#allocation1], 32
    %1484 = vst [vmem:[%s1483] ss:$2 sm:$0xff] %v1470
    %s1485 = scalar_lea.vmem [#allocation1], 48
    %1486 = vst [vmem:[%s1485] ss:$2 sm:$0xff] %v1472
    %v1487 = vld.sshfl [vmem:[#allocation1 + $0x20] sm:$0xff pattern:$0x75316420]
    %v1488 = vld.sshfl [vmem:[#allocation1 + $0x28] sm:$0xff pattern:$0x75316420]
    %v1489 = vld.sshfl [vmem:[#allocation1 + $0x30] sm:$0xff pattern:$0x75316420]
    %v1496 = vsel %vm225, %v1480, 0.0
    %v1497 = vrot.slane %v1496, 4
    %v1498 = vadd.f32 %v1496, %v1497
    %v1499 = vrot.slane %v1498, 2
    %v1500 = vadd.f32 %v1498, %v1499
    %v1501 = vrot.slane %v1500, 1
    %v1502 = vadd.f32 %v1500, %v1501
    %v1503 = vsel %vm225, %v1481, 0.0
    %v1504 = vrot.slane %v1503, 4
    %v1505 = vadd.f32 %v1503, %v1504
    %v1506 = vrot.slane %v1505, 2
    %v1507 = vadd.f32 %v1505, %v1506
    %v1508 = vrot.slane %v1507, 1
    %v1509 = vadd.f32 %v1507, %v1508
    %v1510 = vsel %vm225, %v1482, 0.0
    %v1511 = vrot.slane %v1510, 4
    %v1512 = vadd.f32 %v1510, %v1511
    %v1513 = vrot.slane %v1512, 2
    %v1514 = vadd.f32 %v1512, %v1513
    %v1515 = vrot.slane %v1514, 1
    %v1516 = vadd.f32 %v1514, %v1515
    %v1517 = vsel %vm225, %v1487, 0.0
    %v1518 = vrot.slane %v1517, 4
    %v1519 = vadd.f32 %v1517, %v1518
    %v1520 = vrot.slane %v1519, 2
    %v1521 = vadd.f32 %v1519, %v1520
    %v1522 = vrot.slane %v1521, 1
    %v1523 = vadd.f32 %v1521, %v1522
    %v1524 = vsel %vm225, %v1488, 0.0
    %v1525 = vrot.slane %v1524, 4
    %v1526 = vadd.f32 %v1524, %v1525
    %v1527 = vrot.slane %v1526, 2
    %v1528 = vadd.f32 %v1526, %v1527
    %v1529 = vrot.slane %v1528, 1
    %v1530 = vadd.f32 %v1528, %v1529
    %v1531 = vsel %vm225, %v1489, 0.0
    %v1532 = vrot.slane %v1531, 4
    %v1533 = vadd.f32 %v1531, %v1532
    %v1534 = vrot.slane %v1533, 2
    %v1535 = vadd.f32 %v1533, %v1534
    %v1536 = vrot.slane %v1535, 1
    %v1537 = vadd.f32 %v1535, %v1536
    %v1538 = vrcp.pop %v1502
    %v1539 = vrcp.pop %v1509
    %v1540 = vrcp.pop %v1516
    %v1541 = vrcp.pop %v1523
    %v1542 = vrcp.pop %v1530
    %v1543 = vrcp.pop %v1537
    %v1548 = vrot.slane %v1539, 4
    %v1549 = vrot.slane %v1542, 4
    %v1550 = vsel %vm225, %v1538, %v1548
    %v1551 = vsel %vm225, %v1541, %v1549
    %v1554 = vmul.f32 %v1466, %v1550
    %v1555 = vmul.f32 %v1468, %v1540
    %v1556 = vmul.f32 %v1470, %v1551
    %v1557 = vmul.f32 %v1472, %v1543
    %v1558 = vxor.u32 %v1383, 2147483648
    %v1559 = vxor.u32 %v1363, 2147483648
    %v1560 = vxor.u32 %v1385, 2147483648
    %v1561 = vxor.u32 %v1386, 2147483648
    %v1562 = vmul.f32 %v1558, 1.442695
    %v1563 = vpow.pop %v1562
    %v1564 = vmul.f32 %v1559, 1.442695
    %v1565 = vpow.pop %v1564
    %v1566 = vmul.f32 %v1560, 1.442695
    %v1567 = vpow.pop %v1566
    %v1568 = vmul.f32 %v1561, 1.442695
    %v1569 = vpow.pop %v1568
    %v1570 = vadd.f32 %v1563, 1.0
    %v1571 = vadd.f32 %v1565, 1.0
    %v1572 = vadd.f32 %v1567, 1.0
    %v1573 = vadd.f32 %v1569, 1.0
    %v1574 = vrcp.pop %v1570
    %v1575 = vmul.f32 %v1570, %v1574
    %v1576 = vsub.f32 1.0, %v1575
    %v1577 = vmul.f32 %v1574, %v1576
    %v1578 = vadd.f32 %v1574, %v1577
    %vm1579 = vweird.f32 %v1570
    %vm1580 = vweird.f32 %v1574
    %vm1581 = vmor %vm1579, %vm1580
    %v1582 = vsel %vm1581, %v1574, %v1578
    %v1583 = vand.u32 2147483647, %v1570
    %vm1584 = vcmp.eq.f32.partialorder %v1583, 8.507059e+37
    %v1585 = vand.u32 %v1570, 2147483648
    %v1586 = vor.u32 1.1754944e-38, %v1585
    %v1587 = vsel %vm1584, %v1586, %v1582
    %v1588 = vmul.f32 1.0, %v1587
    %v1589 = vrcp.pop %v1571
    %v1590 = vmul.f32 %v1571, %v1589
    %v1591 = vsub.f32 1.0, %v1590
    %v1592 = vmul.f32 %v1589, %v1591
    %v1593 = vadd.f32 %v1589, %v1592
    %vm1594 = vweird.f32 %v1571
    %vm1595 = vweird.f32 %v1589
    %vm1596 = vmor %vm1594, %vm1595
    %v1597 = vsel %vm1596, %v1589, %v1593
    %v1598 = vand.u32 2147483647, %v1571
    %vm1599 = vcmp.eq.f32.partialorder %v1598, 8.507059e+37
    %v1600 = vand.u32 %v1571, 2147483648
    %v1601 = vor.u32 1.1754944e-38, %v1600
    %v1602 = vsel %vm1599, %v1601, %v1597
    %v1603 = vmul.f32 1.0, %v1602
    %v1604 = vrcp.pop %v1572
    %v1605 = vmul.f32 %v1572, %v1604
    %v1606 = vsub.f32 1.0, %v1605
    %v1607 = vmul.f32 %v1604, %v1606
    %v1608 = vadd.f32 %v1604, %v1607
    %vm1609 = vweird.f32 %v1572
    %vm1610 = vweird.f32 %v1604
    %vm1611 = vmor %vm1609, %vm1610
    %v1612 = vsel %vm1611, %v1604, %v1608
    %v1613 = vand.u32 2147483647, %v1572
    %vm1614 = vcmp.eq.f32.partialorder %v1613, 8.507059e+37
    %v1615 = vand.u32 %v1572, 2147483648
    %v1616 = vor.u32 1.1754944e-38, %v1615
    %v1617 = vsel %vm1614, %v1616, %v1612
    %v1618 = vmul.f32 1.0, %v1617
    %v1619 = vrcp.pop %v1573
    %v1620 = vmul.f32 %v1573, %v1619
    %v1621 = vsub.f32 1.0, %v1620
    %v1622 = vmul.f32 %v1619, %v1621
    %v1623 = vadd.f32 %v1619, %v1622
    %vm1624 = vweird.f32 %v1573
    %vm1625 = vweird.f32 %v1619
    %vm1626 = vmor %vm1624, %vm1625
    %v1627 = vsel %vm1626, %v1619, %v1623
    %v1628 = vand.u32 2147483647, %v1573
    %vm1629 = vcmp.eq.f32.partialorder %v1628, 8.507059e+37
    %v1630 = vand.u32 %v1573, 2147483648
    %v1631 = vor.u32 1.1754944e-38, %v1630
    %v1632 = vsel %vm1629, %v1631, %v1627
    %v1633 = vmul.f32 1.0, %v1632
    %v1634 = vmul.f32 %v1588, %v1554
    %v1635 = vmul.f32 %v1603, %v1555
    %v1636 = vmul.f32 %v1618, %v1556
    %v1637 = vmul.f32 %v1633, %v1557
    %1642 = vst [vmem:[#allocation1] ss:$2 sm:$0xff] %v1634
    %s1643 = scalar_lea.vmem [#allocation1], 16
    %1644 = vst [vmem:[%s1643] ss:$2 sm:$0xff] %v1635
    %v1645 = vld.sshfl [vmem:[#allocation1] sm:$0xff pattern:$0x75316420]
    %v1646 = vld.sshfl [vmem:[#allocation1 + $0x8] sm:$0xff pattern:$0x75316420]
    %v1647 = vld.sshfl [vmem:[#allocation1 + $0x10] sm:$0xff pattern:$0x75316420]
    %s1648 = scalar_lea.vmem [#allocation1], 32
    %1649 = vst [vmem:[%s1648] ss:$2 sm:$0xff] %v1636
    %s1650 = scalar_lea.vmem [#allocation1], 48
    %1651 = vst [vmem:[%s1650] ss:$2 sm:$0xff] %v1637
    %v1652 = vld.sshfl [vmem:[#allocation1 + $0x20] sm:$0xff pattern:$0x75316420]
    %v1653 = vld.sshfl [vmem:[#allocation1 + $0x28] sm:$0xff pattern:$0x75316420]
    %v1654 = vld.sshfl [vmem:[#allocation1 + $0x30] sm:$0xff pattern:$0x75316420]
    %v1661 = vsel %vm225, %v1645, 0.0
    %v1662 = vrot.slane %v1661, 4
    %v1663 = vadd.f32 %v1661, %v1662
    %v1664 = vrot.slane %v1663, 2
    %v1665 = vadd.f32 %v1663, %v1664
    %v1666 = vrot.slane %v1665, 1
    %v1667 = vadd.f32 %v1665, %v1666
    %v1668 = vsel %vm225, %v1646, 0.0
    %v1669 = vrot.slane %v1668, 4
    %v1670 = vadd.f32 %v1668, %v1669
    %v1671 = vrot.slane %v1670, 2
    %v1672 = vadd.f32 %v1670, %v1671
    %v1673 = vrot.slane %v1672, 1
    %v1674 = vadd.f32 %v1672, %v1673
    %v1675 = vsel %vm225, %v1647, 0.0
    %v1676 = vrot.slane %v1675, 4
    %v1677 = vadd.f32 %v1675, %v1676
    %v1678 = vrot.slane %v1677, 2
    %v1679 = vadd.f32 %v1677, %v1678
    %v1680 = vrot.slane %v1679, 1
    %v1681 = vadd.f32 %v1679, %v1680
    %v1682 = vsel %vm225, %v1652, 0.0
    %v1683 = vrot.slane %v1682, 4
    %v1684 = vadd.f32 %v1682, %v1683
    %v1685 = vrot.slane %v1684, 2
    %v1686 = vadd.f32 %v1684, %v1685
    %v1687 = vrot.slane %v1686, 1
    %v1688 = vadd.f32 %v1686, %v1687
    %v1689 = vsel %vm225, %v1653, 0.0
    %v1690 = vrot.slane %v1689, 4
    %v1691 = vadd.f32 %v1689, %v1690
    %v1692 = vrot.slane %v1691, 2
    %v1693 = vadd.f32 %v1691, %v1692
    %v1694 = vrot.slane %v1693, 1
    %v1695 = vadd.f32 %v1693, %v1694
    %v1696 = vsel %vm225, %v1654, 0.0
    %v1697 = vrot.slane %v1696, 4
    %v1698 = vadd.f32 %v1696, %v1697
    %v1699 = vrot.slane %v1698, 2
    %v1700 = vadd.f32 %v1698, %v1699
    %v1701 = vrot.slane %v1700, 1
    %v1702 = vadd.f32 %v1700, %v1701
    %v1709 = vrot.slane %v1674, 7
    %v1710 = vrot.slane %v1681, 6
    %v1711 = vrot.slane %v1695, 7
    %v1712 = vrot.slane %v1702, 6
    %vm1713 = vcmask 1040384
    %v1714 = vsel %vm1713, %v1667, %v1709
    %vm1715 = vcmask 1041408
    %v1716 = vsel %vm1715, %v1714, %v1710
    %v1717 = vsel %vm1713, %v1688, %v1711
    %v1718 = vsel %vm1715, %v1717, %v1712
    %v1721 = vlaneseq
    %vm1722 = vcmp.ge.s32.totalorder %v1721, 0
    %vm1723 = vcmp.lt.s32.totalorder %v1721, 384
    %vm1724 = vmand %vm1722, %vm1723
    %1725 = vst.msk [vmem:[#allocation16] sm:$0x7] %vm1724, %v1716
    %1726 = vst.msk [vmem:[#allocation16 + $0x3] sm:$0x7] %vm1724, %v1718
    %1727 = vst [vmem:[#allocation17] sm:$0xff] %v1383
    %1728 = vst [vmem:[#allocation17 + $0x8] sm:$0xf] %v1363
    %1729 = vst [vmem:[#allocation17 + $0xc] sm:$0xff] %v1385
    %1730 = vst [vmem:[#allocation17 + $0x14] sm:$0xf] %v1386
    // Predicated region
    $region66: #{tpu_custom_call.1} parent=1 // pred_check
      _
    $region67: #{tpu_custom_call.1} parent=1 // pred_check_branch
      %1732 = sbr.rel (0) target = $region69
    $region68: #{tpu_custom_call.1} parent=1 // pred_region
      %1734 = vsyncadd [#allocation4], 0
      %s1735 = sshll.u32 [#allocation16], 4
      %s1736 = int_to_ptr.vmem [resolvable:$true] %s1735
      %s1737 = sshll.u32 %s8, 4
      %s1738 = int_to_ptr.hbm [resolvable:$true] %s1737
      %1743 = dma.vmem_to_hbm [thread:$0]  %s1736, 96, %s1738, [#allocation4], 48, 48, 3
    $region69: #{tpu_custom_call.1} parent=1 // pred_fallthru
      _
    // Predicated region
    $region70: #{tpu_custom_call.1} parent=1 // pred_check
      _
    $region71: #{tpu_custom_call.1} parent=1 // pred_check_branch
      %1745 = sbr.rel (0) target = $region73
    $region72: #{tpu_custom_call.1} parent=1 // pred_region
      %1747 = vsyncadd [#allocation18], 0
      %s1748 = sshll.u32 [#allocation17], 4
      %s1749 = int_to_ptr.vmem [resolvable:$true] %s1748
      %s1750 = sshll.u32 %s9, 4
      %s1751 = int_to_ptr.hbm [resolvable:$true] %s1750
      %1756 = dma.vmem_to_hbm [thread:$0]  %s1749, 384, %s1751, [#allocation18], 192, 192, 12
    $region73: #{tpu_custom_call.1} parent=1 // pred_fallthru
      _
    // Predicated region
    $region74: #{tpu_custom_call.1} parent=1 // pred_check
      _
    $region75: #{tpu_custom_call.1} parent=1 // pred_check_branch
      %1758 = sbr.rel (0) target = $region77
    $region76: #{tpu_custom_call.1} parent=1 // pred_region
      %1760 = dma.done [#allocation4], 96
    $region77: #{tpu_custom_call.1} parent=1 // pred_fallthru
      _
    // Predicated region
    $region78: #{tpu_custom_call.1} parent=1 // pred_check
      _
    $region79: #{tpu_custom_call.1} parent=1 // pred_check_branch
      %1762 = sbr.rel (0) target = $region81
    $region80: #{tpu_custom_call.1} parent=1 // pred_region
      %1764 = dma.done [#allocation18], 384
    $region81: #{tpu_custom_call.1} parent=1 // pred_fallthru
      _
    %1765 = vsyncpa [#allocation3], 1
    %1766 = vsyncpa [#allocation8], 1
    %1767 = vsyncpa [#allocation11], 1
    %1768 = vsyncpa [#allocation14], 1
    %1769 = vsyncpa [#allocation4], 1
    %1770 = vsyncpa [#allocation18], 1
    %1771 = vsyncpa [#allocation5], 1

</llo_original>
